<compile_context>
chip_gen: v7x
topology: tpu7x:2x2x1
jax: 0.10.0
libtpu: 0.0.40
codegen_flags: <defaults>
</compile_context>

<pallas_src>
import functools

import jax
import jax.numpy as jnp
from jax import lax
from jax.experimental import pallas as pl
from jax.experimental.pallas import tpu as pltpu


_LANE = 128
_MAX_TILE_B = 8192  # lanes per grid step; ~0.5-2 MiB per stream, far under VMEM limits


def _round_up(x, m):
    return ((x + m - 1) // m) * m


def _plan_batch_tiling(batch):
    """Pick the lane-dim (batch) tile and grid length.

    batch < 256 : one block whose lane dim equals the full array dim (always legal).
    otherwise   : two lane-dense (multiple-of-128) tiles so the "parallel" grid axis
                  shards one tile per TensorCore on v7x; huge batches fall back to
                  _MAX_TILE_B-wide tiles.
    """
    if batch < 2 * _LANE:
        return batch, 1
    tile = min(_round_up(-(-batch // 2), _LANE), _MAX_TILE_B)
    return tile, -(-batch // tile)


def _default_compute_dtype():
    """bf16 on v6e/v7x (halves HBM bytes, bf16-native VPU/MXU); f32 on v5e and older."""
    try:
        kind = jax.devices()[0].device_kind.lower()
    except Exception:
        return jnp.float32
    if any(tag in kind for tag in ("v2", "v3", "v4", "v5")):
        return jnp.float32
    return jnp.bfloat16


def _ffnn_kernel(yin_t_ref, xin_t_ref,
                 w1_ref, b1_ref, w2_ref, b2_ref,
                 w3_ref, b3_ref, w4_ref, b4_ref,
                 xhat_t_ref, loss_ref,
                 *, batch, tile_b):
    mxu_dtype = w1_ref.dtype  # bf16 or f32; biases/accumulation/MSE stay f32

    x = yin_t_ref[...]  # (in_size, tile_b) -- batch on lanes
    h = jnp.dot(w1_ref[...], x, preferred_element_type=jnp.float32) + b1_ref[...]
    h = jnp.maximum(h, 0.0).astype(mxu_dtype)
    h = jnp.dot(w2_ref[...], h, preferred_element_type=jnp.float32) + b2_ref[...]
    h = jnp.maximum(h, 0.0).astype(mxu_dtype)
    h = jnp.dot(w3_ref[...], h, preferred_element_type=jnp.float32) + b3_ref[...]
    h = jnp.maximum(h, 0.0).astype(mxu_dtype)
    x_hat = jnp.dot(w4_ref[...], h, preferred_element_type=jnp.float32) + b4_ref[...]
    # x_hat: (out_size, tile_b), f32

    # Lane-dense store of x_hat^T in the compute dtype (out-of-bounds lanes of the
    # ragged last tile are dropped by the output DMA).
    xhat_t_ref[...] = x_hat.astype(xhat_t_ref.dtype)

    # Per-tile partial sum of squared error in f32.  For a ragged last tile the
    # padded lanes hold garbage -> mask them before the reduction so the final mean
    # (done outside, / (B * out_size)) matches F.mse_loss exactly.
    diff = x_hat - xin_t_ref[...].astype(jnp.float32)
    if batch % tile_b != 0:
        col = pl.program_id(0) * tile_b + lax.broadcasted_iota(jnp.int32, diff.shape, 1)
        diff = jnp.where(col < batch, diff, 0.0)
    partial = jnp.sum(diff * diff)
    # Lane-dense write: broadcast the scalar over a full (1, 8, 128) slab row.
    loss_ref[...] = jnp.full(loss_ref.shape, partial, dtype=loss_ref.dtype)


def ffnn_forward(yin, xin, params, *, compute_dtype=None):
    """Pallas implementation of FFNN.forward(xin, yin).

    yin: [B, input_size]  -- network input
    xin: [B, output_size] -- reconstruction target
    Returns (m_loss, x_hat, (recon_loss, kld_loss), 0, 0) like the torch module.
    """
    B, in_size = yin.shape
    hidden = params["w1"].shape[1]
    out_size = params["w4"].shape[1]
    assert xin.shape == (B, out_size)

    if compute_dtype is None:
        compute_dtype = _default_compute_dtype()

    tile_b, num_tiles = _plan_batch_tiling(B)

    # Batch on lanes: one cheap transpose/cast pass outside the kernel buys
    # lane-dense DMA streams and full-width MXU N inside it.
    yin_t = yin.T.astype(compute_dtype)   # (in_size, B)
    xin_t = xin.T.astype(compute_dtype)   # (out_size, B)

    # Weights as (out_features, in_features) (torch layout) for h^T = W @ x^T.
    # Biases as column vectors, kept f32 (added after f32 MXU accumulation).
    w1 = params["w1"].T.astype(compute_dtype); b1 = params["b1"].reshape(-1, 1).astype(jnp.float32)
    w2 = params["w2"].T.astype(compute_dtype); b2 = params["b2"].reshape(-1, 1).astype(jnp.float32)
    w3 = params["w3"].T.astype(compute_dtype); b3 = params["b3"].reshape(-1, 1).astype(jnp.float32)
    w4 = params["w4"].T.astype(compute_dtype); b4 = params["b4"].reshape(-1, 1).astype(jnp.float32)

    kernel = functools.partial(_ffnn_kernel, batch=B, tile_b=tile_b)

    def resident(shape):
        return pl.BlockSpec(shape, lambda i: (0,) * len(shape))

    itemsize = jnp.dtype(compute_dtype).itemsize
    flops = 2 * B * (in_size * hidden + 2 * hidden * hidden + hidden * out_size)
    bytes_accessed = (
        yin_t.size * itemsize + xin_t.size * itemsize + B * out_size * itemsize
        + (w1.size + w2.size + w3.size + w4.size) * itemsize
        + (b1.size + b2.size + b3.size + b4.size) * 4
        + num_tiles * 8 * 128 * 4
    )

    x_hat_t, partials = pl.pallas_call(
        kernel,
        out_shape=(
            jax.ShapeDtypeStruct((out_size, B), compute_dtype),
            jax.ShapeDtypeStruct((num_tiles, 8, 128), jnp.float32),
        ),
        grid=(num_tiles,),
        in_specs=[
            pl.BlockSpec((in_size, tile_b), lambda i: (0, i)),    # yin^T tile (pipelined)
            pl.BlockSpec((out_size, tile_b), lambda i: (0, i)),   # xin^T tile (pipelined)
            resident(w1.shape), resident(b1.shape),               # weights/biases resident
            resident(w2.shape), resident(b2.shape),
            resident(w3.shape), resident(b3.shape),
            resident(w4.shape), resident(b4.shape),
        ],
        out_specs=(
            pl.BlockSpec((out_size, tile_b), lambda i: (0, i)),
            pl.BlockSpec((1, 8, 128), lambda i: (i, 0, 0)),
        ),
        compiler_params=pltpu.CompilerParams(
            dimension_semantics=("parallel",),
        ),
        cost_estimate=pl.CostEstimate(
            flops=flops, transcendentals=0, bytes_accessed=bytes_accessed),
    )(yin_t, xin_t, w1, b1, w2, b2, w3, b3, w4, b4)

    x_hat = x_hat_t.T                                   # (B, out_size), compute dtype
    recon_loss = jnp.sum(partials[:, 0, 0]) / (B * out_size)
    m_loss = recon_loss
    kld_loss = 0.0
    return m_loss, x_hat, (recon_loss, kld_loss), 0, 0


def init_params(key, input_size, hidden_size, output_size):
    """Deterministic synthetic init (uniform, like torch Linear default scale)."""
    def linear(k, fan_in, fan_out):
        kw, kb = jax.random.split(k)
        bound = 1.0 / jnp.sqrt(fan_in)
        w = jax.random.uniform(kw, (fan_in, fan_out), jnp.float32, -bound, bound)
        b = jax.random.uniform(kb, (1, fan_out), jnp.float32, -bound, bound)
        return w, b

    k1, k2, k3, k4 = jax.random.split(key, 4)
    w1, b1 = linear(k1, input_size, hidden_size)
    w2, b2 = linear(k2, hidden_size, hidden_size)
    w3, b3 = linear(k3, hidden_size, hidden_size)
    w4, b4 = linear(k4, hidden_size, output_size)
    return {"w1": w1, "b1": b1, "w2": w2, "b2": b2,
            "w3": w3, "b3": b3, "w4": w4, "b4": b4}


def _reference(yin, xin, p):
    h = jnp.maximum(yin @ p["w1"] + p["b1"], 0.0)
    h = jnp.maximum(h @ p["w2"] + p["b2"], 0.0)
    h = jnp.maximum(h @ p["w3"] + p["b3"], 0.0)
    x_hat = h @ p["w4"] + p["b4"]
    return jnp.mean((x_hat - xin) ** 2), x_hat


if __name__ == "__main__":
    # Batch chosen to exercise the 2-tile lane-dense grid and the ragged last tile
    # (1000 = 512 + 488); features as in the module.
    B, INPUT_SIZE, HIDDEN_SIZE, OUTPUT_SIZE = 1000, 16, 32, 16

    key = jax.random.PRNGKey(0)
    kp, ky, kx = jax.random.split(key, 3)
    params = init_params(kp, INPUT_SIZE, HIDDEN_SIZE, OUTPUT_SIZE)
    yin = jax.random.normal(ky, (B, INPUT_SIZE), jnp.float32)
    xin = jax.random.normal(kx, (B, OUTPUT_SIZE), jnp.float32)

    # Explicit f32 path: must match the pure-JAX reference tightly.
    fwd_f32 = jax.jit(functools.partial(ffnn_forward, compute_dtype=jnp.float32))
    m_loss, x_hat, (recon_loss, kld_loss), _, _ = fwd_f32(yin, xin, params)
    jax.block_until_ready((m_loss, x_hat, recon_loss))

    ref_loss, ref_xhat = _reference(yin, xin, params)
    assert x_hat.shape == (B, OUTPUT_SIZE)
    assert jnp.allclose(x_hat.astype(jnp.float32), ref_xhat, atol=1e-5, rtol=1e-5)
    assert jnp.allclose(m_loss, ref_loss, atol=1e-5, rtol=1e-5)
    assert float(kld_loss) == 0.0

    # Default chip-dispatched path (bf16 on v6e/v7x, f32 on v5e/older); coarse check.
    m_loss_d, x_hat_d, (recon_d, _), _, _ = ffnn_forward(yin, xin, params)
    jax.block_until_ready((m_loss_d, x_hat_d))
    assert x_hat_d.shape == (B, OUTPUT_SIZE)
    assert bool(jnp.isfinite(m_loss_d))
    assert abs(float(m_loss_d) - float(ref_loss)) / float(ref_loss) < 0.1

    print("KERNEL_OK")
</pallas_src>

<mosaic_0001>
module attributes {stable_mosaic.version = 11 : i64} {
  func.func @_ffnn_kernel(%arg0: i32, %arg1: memref<16x512xf32, #tpu.memory_space<vmem>>, %arg2: memref<16x512xf32, #tpu.memory_space<vmem>>, %arg3: memref<32x16xf32, #tpu.memory_space<vmem>>, %arg4: memref<32x1xf32, #tpu.memory_space<vmem>>, %arg5: memref<32x32xf32, #tpu.memory_space<vmem>>, %arg6: memref<32x1xf32, #tpu.memory_space<vmem>>, %arg7: memref<32x32xf32, #tpu.memory_space<vmem>>, %arg8: memref<32x1xf32, #tpu.memory_space<vmem>>, %arg9: memref<16x32xf32, #tpu.memory_space<vmem>>, %arg10: memref<16x1xf32, #tpu.memory_space<vmem>>, %arg11: memref<16x512xf32, #tpu.memory_space<vmem>>, %arg12: memref<1x8x128xf32, #tpu.memory_space<vmem>>) attributes {dimension_semantics = [#tpu.dimension_semantics<parallel>], iteration_bounds = array<i64: 2>, scalar_prefetch = 0 : i64, scratch_operands = 0 : i64, tpu.core_type = #tpu.core_type<tc>, window_params = [{transform_indices = @transform_0, window_bounds = array<i64: 16, 512>}, {transform_indices = @transform_1, window_bounds = array<i64: 16, 512>}, {pipeline_mode = #tpu.pipeline_mode<synchronous>, transform_indices = @transform_2, window_bounds = array<i64: 32, 16>}, {pipeline_mode = #tpu.pipeline_mode<synchronous>, transform_indices = @transform_3, window_bounds = array<i64: 32, 1>}, {pipeline_mode = #tpu.pipeline_mode<synchronous>, transform_indices = @transform_4, window_bounds = array<i64: 32, 32>}, {pipeline_mode = #tpu.pipeline_mode<synchronous>, transform_indices = @transform_5, window_bounds = array<i64: 32, 1>}, {pipeline_mode = #tpu.pipeline_mode<synchronous>, transform_indices = @transform_6, window_bounds = array<i64: 32, 32>}, {pipeline_mode = #tpu.pipeline_mode<synchronous>, transform_indices = @transform_7, window_bounds = array<i64: 32, 1>}, {pipeline_mode = #tpu.pipeline_mode<synchronous>, transform_indices = @transform_8, window_bounds = array<i64: 16, 32>}, {pipeline_mode = #tpu.pipeline_mode<synchronous>, transform_indices = @transform_9, window_bounds = array<i64: 16, 1>}, {transform_indices = @transform_10, window_bounds = array<i64: 16, 512>}, {transform_indices = @transform_11, window_bounds = array<i64: 1, 8, 128>}]} {
    %c0 = arith.constant 0 : index
    %c0_0 = arith.constant 0 : index
    %0 = vector.load %arg1[%c0, %c0_0] : memref<16x512xf32, #tpu.memory_space<vmem>>, vector<16x512xf32>
    %c0_1 = arith.constant 0 : index
    %c0_2 = arith.constant 0 : index
    %1 = vector.load %arg3[%c0_1, %c0_2] : memref<32x16xf32, #tpu.memory_space<vmem>>, vector<32x16xf32>
    %cst = arith.constant dense<0.000000e+00> : vector<32x512xf32>
    %2 = tpu.matmul %1, %0, %cst {dimension_numbers = #tpu.dot_dimension_numbers<[1], [0], [0], [1], [0, 0, 1, 1], [], []>} : vector<32x16xf32>, vector<16x512xf32>, vector<32x512xf32> -> vector<32x512xf32>
    %c0_3 = arith.constant 0 : index
    %c0_4 = arith.constant 0 : index
    %3 = vector.load %arg4[%c0_3, %c0_4] : memref<32x1xf32, #tpu.memory_space<vmem>>, vector<32x1xf32>
    %4 = vector.broadcast %3 : vector<32x1xf32> to vector<32x512xf32>
    %5 = arith.addf %2, %4 : vector<32x512xf32>
    %cst_5 = arith.constant 0.000000e+00 : f32
    %6 = vector.broadcast %cst_5 : f32 to vector<32x512xf32>
    %7 = arith.maximumf %5, %6 : vector<32x512xf32>
    %c0_6 = arith.constant 0 : index
    %c0_7 = arith.constant 0 : index
    %8 = vector.load %arg5[%c0_6, %c0_7] : memref<32x32xf32, #tpu.memory_space<vmem>>, vector<32x32xf32>
    %cst_8 = arith.constant dense<0.000000e+00> : vector<32x512xf32>
    %9 = tpu.matmul %8, %7, %cst_8 {dimension_numbers = #tpu.dot_dimension_numbers<[1], [0], [0], [1], [0, 0, 1, 1], [], []>} : vector<32x32xf32>, vector<32x512xf32>, vector<32x512xf32> -> vector<32x512xf32>
    %c0_9 = arith.constant 0 : index
    %c0_10 = arith.constant 0 : index
    %10 = vector.load %arg6[%c0_9, %c0_10] : memref<32x1xf32, #tpu.memory_space<vmem>>, vector<32x1xf32>
    %11 = vector.broadcast %10 : vector<32x1xf32> to vector<32x512xf32>
    %12 = arith.addf %9, %11 : vector<32x512xf32>
    %cst_11 = arith.constant 0.000000e+00 : f32
    %13 = vector.broadcast %cst_11 : f32 to vector<32x512xf32>
    %14 = arith.maximumf %12, %13 : vector<32x512xf32>
    %c0_12 = arith.constant 0 : index
    %c0_13 = arith.constant 0 : index
    %15 = vector.load %arg7[%c0_12, %c0_13] : memref<32x32xf32, #tpu.memory_space<vmem>>, vector<32x32xf32>
    %cst_14 = arith.constant dense<0.000000e+00> : vector<32x512xf32>
    %16 = tpu.matmul %15, %14, %cst_14 {dimension_numbers = #tpu.dot_dimension_numbers<[1], [0], [0], [1], [0, 0, 1, 1], [], []>} : vector<32x32xf32>, vector<32x512xf32>, vector<32x512xf32> -> vector<32x512xf32>
    %c0_15 = arith.constant 0 : index
    %c0_16 = arith.constant 0 : index
    %17 = vector.load %arg8[%c0_15, %c0_16] : memref<32x1xf32, #tpu.memory_space<vmem>>, vector<32x1xf32>
    %18 = vector.broadcast %17 : vector<32x1xf32> to vector<32x512xf32>
    %19 = arith.addf %16, %18 : vector<32x512xf32>
    %cst_17 = arith.constant 0.000000e+00 : f32
    %20 = vector.broadcast %cst_17 : f32 to vector<32x512xf32>
    %21 = arith.maximumf %19, %20 : vector<32x512xf32>
    %c0_18 = arith.constant 0 : index
    %c0_19 = arith.constant 0 : index
    %22 = vector.load %arg9[%c0_18, %c0_19] : memref<16x32xf32, #tpu.memory_space<vmem>>, vector<16x32xf32>
    %cst_20 = arith.constant dense<0.000000e+00> : vector<16x512xf32>
    %23 = tpu.matmul %22, %21, %cst_20 {dimension_numbers = #tpu.dot_dimension_numbers<[1], [0], [0], [1], [0, 0, 1, 1], [], []>} : vector<16x32xf32>, vector<32x512xf32>, vector<16x512xf32> -> vector<16x512xf32>
    %c0_21 = arith.constant 0 : index
    %c0_22 = arith.constant 0 : index
    %24 = vector.load %arg10[%c0_21, %c0_22] : memref<16x1xf32, #tpu.memory_space<vmem>>, vector<16x1xf32>
    %25 = vector.broadcast %24 : vector<16x1xf32> to vector<16x512xf32>
    %26 = arith.addf %23, %25 : vector<16x512xf32>
    %c0_23 = arith.constant 0 : index
    %c0_24 = arith.constant 0 : index
    %27 = vector.load %arg11[%c0_23, %c0_24] : memref<16x512xf32, #tpu.memory_space<vmem>>, vector<16x512xf32>
    tpu.vector_store %arg11[%c0_23, %c0_24], %26 {strides = array<i32>} : memref<16x512xf32, #tpu.memory_space<vmem>>, vector<16x512xf32>,
    %c0_25 = arith.constant 0 : index
    %c0_26 = arith.constant 0 : index
    %28 = vector.load %arg2[%c0_25, %c0_26] : memref<16x512xf32, #tpu.memory_space<vmem>>, vector<16x512xf32>
    %29 = arith.subf %26, %28 : vector<16x512xf32>
    %c512_i32 = arith.constant 512 : i32
    %30 = arith.muli %arg0, %c512_i32 : i32
    %31 = tpu.iota {dimensions = array<i32: 1>} : vector<16x512xi32>
    %32 = vector.broadcast %30 : i32 to vector<16x512xi32>
    %33 = arith.addi %32, %31 : vector<16x512xi32>
    %c1000_i32 = arith.constant 1000 : i32
    %34 = vector.broadcast %c1000_i32 : i32 to vector<16x512xi32>
    %35 = arith.cmpi slt, %33, %34 : vector<16x512xi32>
    %cst_27 = arith.constant 0.000000e+00 : f32
    %36 = vector.broadcast %cst_27 : f32 to vector<16x512xf32>
    %37 = arith.select %35, %29, %36 : vector<16x512xi1>, vector<16x512xf32>
    %38 = arith.mulf %37, %37 : vector<16x512xf32>
    %39 = vector.shape_cast %38 : vector<16x512xf32> to vector<1x16x512xf32>
    %cst_28 = arith.constant dense<0.000000e+00> : vector<1xf32>
    %40 = vector.multi_reduction <add>, %39, %cst_28 [1, 2] : vector<1x16x512xf32> to vector<1xf32>
    %41 = vector.shape_cast %40 : vector<1xf32> to vector<1x1x1xf32>
    %42 = vector.extract %41[0, 0, 0] : f32 from vector<1x1x1xf32>
    %43 = vector.broadcast %42 : f32 to vector<1x8x128xf32>
    %c0_29 = arith.constant 0 : index
    %c0_30 = arith.constant 0 : index
    %c0_31 = arith.constant 0 : index
    %44 = vector.load %arg12[%c0_29, %c0_30, %c0_31] : memref<1x8x128xf32, #tpu.memory_space<vmem>>, vector<1x8x128xf32>
    tpu.vector_store %arg12[%c0_29, %c0_30, %c0_31], %43 {strides = array<i32>} : memref<1x8x128xf32, #tpu.memory_space<vmem>>, vector<1x8x128xf32>,
    return
  }
  func.func @transform_0(%arg0: i32) -> (i32, i32) {
    %c0_i32 = arith.constant 0 : i32
    %c0_i32_0 = arith.constant 0 : i32
    return %c0_i32, %arg0 : i32, i32
  }
  func.func @transform_1(%arg0: i32) -> (i32, i32) {
    %c0_i32 = arith.constant 0 : i32
    %c0_i32_0 = arith.constant 0 : i32
    return %c0_i32, %arg0 : i32, i32
  }
  func.func @transform_2(%arg0: i32) -> (i32, i32) {
    %c0_i32 = arith.constant 0 : i32
    %c0_i32_0 = arith.constant 0 : i32
    %c0_i32_1 = arith.constant 0 : i32
    return %c0_i32, %c0_i32_0 : i32, i32
  }
  func.func @transform_3(%arg0: i32) -> (i32, i32) {
    %c0_i32 = arith.constant 0 : i32
    %c0_i32_0 = arith.constant 0 : i32
    %c0_i32_1 = arith.constant 0 : i32
    return %c0_i32, %c0_i32_0 : i32, i32
  }
  func.func @transform_4(%arg0: i32) -> (i32, i32) {
    %c0_i32 = arith.constant 0 : i32
    %c0_i32_0 = arith.constant 0 : i32
    %c0_i32_1 = arith.constant 0 : i32
    return %c0_i32, %c0_i32_0 : i32, i32
  }
  func.func @transform_5(%arg0: i32) -> (i32, i32) {
    %c0_i32 = arith.constant 0 : i32
    %c0_i32_0 = arith.constant 0 : i32
    %c0_i32_1 = arith.constant 0 : i32
    return %c0_i32, %c0_i32_0 : i32, i32
  }
  func.func @transform_6(%arg0: i32) -> (i32, i32) {
    %c0_i32 = arith.constant 0 : i32
    %c0_i32_0 = arith.constant 0 : i32
    %c0_i32_1 = arith.constant 0 : i32
    return %c0_i32, %c0_i32_0 : i32, i32
  }
  func.func @transform_7(%arg0: i32) -> (i32, i32) {
    %c0_i32 = arith.constant 0 : i32
    %c0_i32_0 = arith.constant 0 : i32
    %c0_i32_1 = arith.constant 0 : i32
    return %c0_i32, %c0_i32_0 : i32, i32
  }
  func.func @transform_8(%arg0: i32) -> (i32, i32) {
    %c0_i32 = arith.constant 0 : i32
    %c0_i32_0 = arith.constant 0 : i32
    %c0_i32_1 = arith.constant 0 : i32
    return %c0_i32, %c0_i32_0 : i32, i32
  }
  func.func @transform_9(%arg0: i32) -> (i32, i32) {
    %c0_i32 = arith.constant 0 : i32
    %c0_i32_0 = arith.constant 0 : i32
    %c0_i32_1 = arith.constant 0 : i32
    return %c0_i32, %c0_i32_0 : i32, i32
  }
  func.func @transform_10(%arg0: i32) -> (i32, i32) {
    %c0_i32 = arith.constant 0 : i32
    %c0_i32_0 = arith.constant 0 : i32
    return %c0_i32, %arg0 : i32, i32
  }
  func.func @transform_11(%arg0: i32) -> (i32, i32, i32) {
    %c0_i32 = arith.constant 0 : i32
    %c0_i32_0 = arith.constant 0 : i32
    %c0_i32_1 = arith.constant 0 : i32
    return %arg0, %c0_i32, %c0_i32_0 : i32, i32, i32
  }
}

</mosaic_0001>

<llo_original>
// kernel: ffnn_forward.1
$region0: #{ffnn_forward.1}
  #allocation0 [shape = 'u32[]', space=smem, size = 0x4, offset = 0x4, fixed_abs, tag = 'smem constant byte address 0x4 - core index']
  #allocation1 [shape = 'u32[144,128]{1,0:T(1,128)}', space=vmem, size = 0x12000, scoped, tag = 'internal scratch']
  %s0 = inlined_call_operand.vmem [shape: f32[16,1000], index: 0, kind: input, shape index: {}]
  %s1 = inlined_call_operand.vmem [shape: f32[16,1000], index: 1, kind: input, shape index: {}]
  %s2 = inlined_call_operand.vmem [shape: f32[32,16], index: 2, kind: input, shape index: {}]
  %s3 = inlined_call_operand.vmem [shape: f32[32,1], index: 3, kind: input, shape index: {}]
  %s4 = inlined_call_operand.vmem [shape: f32[32,32], index: 4, kind: input, shape index: {}]
  %s5 = inlined_call_operand.vmem [shape: f32[32,1], index: 5, kind: input, shape index: {}]
  %s6 = inlined_call_operand.vmem [shape: f32[32,32], index: 6, kind: input, shape index: {}]
  %s7 = inlined_call_operand.vmem [shape: f32[32,1], index: 7, kind: input, shape index: {}]
  %s8 = inlined_call_operand.vmem [shape: f32[16,32], index: 8, kind: input, shape index: {}]
  %s9 = inlined_call_operand.vmem [shape: f32[16,1], index: 9, kind: input, shape index: {}]
  %s10 = inlined_call_operand.hbm [shape: f32[16,1000], index: 10, kind: output, shape index: {0}]
  %s11 = inlined_call_operand.vmem [shape: f32[2,8,128], index: 11, kind: output, shape index: {1}]
  %12 = xla_tuple %s10, %s11
  %s13 = sld [smem:[#allocation0]]
  $region127: #{ffnn_forward.1} parent=0
    _
  %s15 = ssub.s32 1, %s13
  %s16 = scalar_select 0, %s15, %s13
  $region1: #{ffnn_forward.1} parent=0
    #allocation2 [shape = 'u8[65536]{0}', space=vmem, size = 0x10000, scoped, tag = 'input window, operand 0']
    #allocation3 [shape = 'u8[65536]{0}', space=vmem, size = 0x10000, scoped, tag = 'input window, operand 1']
    #allocation4 [shape = 'u8[65536]{0}', space=vmem, size = 0x10000, scoped, tag = 'output window, operand 0']
    #allocation5 [shape = 's32[2]{0}', space=sflag, size = 0x8, scoped, tag = 'scoped memory for ffnn_forward.1']
    %17 = vsyncpa [#allocation5], 0
    %s18 = scalar_lea.sflag [#allocation5], 1
    %19 = vsyncpa %s18, 0
    loop: start=0, step=1, limit=4
    $region2: #{ffnn_forward.1} parent=1 // loop_pre_header
      _
    $region3: #{ffnn_forward.1} parent=1 // loop_header
      %s21 = sphi 0, %s25
      %p22 = scmp.ge.s32.totalorder %s21, 4
      %s31 = sphi 0, %s33
      %s34 = sphi 0, %s31
      %s35 = sphi 0, %s34
      %s51 = sphi 0, %s35
      %s57 = sphi 0, %s59
      %s60 = sphi 0, %s57
      %s61 = sphi 0, %s60
      %s77 = sphi 0, %s61
      %s81 = sphi 0, %s81
      %s83 = sphi 0, %s81
      %s84 = sphi 0, %s83
      %s98 = sphi 0, %s84
      %s102 = sphi 0, %s102
      %s104 = sphi 0, %s102
      %s105 = sphi 0, %s104
      %s119 = sphi 0, %s105
      %s123 = sphi 0, %s123
      %s125 = sphi 0, %s123
      %s126 = sphi 0, %s125
      %s140 = sphi 0, %s126
      %s144 = sphi 0, %s144
      %s146 = sphi 0, %s144
      %s147 = sphi 0, %s146
      %s161 = sphi 0, %s147
      %s165 = sphi 0, %s165
      %s167 = sphi 0, %s165
      %s168 = sphi 0, %s167
      %s182 = sphi 0, %s168
      %s186 = sphi 0, %s186
      %s188 = sphi 0, %s186
      %s189 = sphi 0, %s188
      %s203 = sphi 0, %s189
      %s207 = sphi 0, %s207
      %s209 = sphi 0, %s207
      %s210 = sphi 0, %s209
      %s224 = sphi 0, %s210
      %s228 = sphi 0, %s228
      %s230 = sphi 0, %s228
      %s231 = sphi 0, %s230
      %s245 = sphi 0, %s231
      %s251 = sphi 0, %s253
      %s254 = sphi 0, %s251
      %s255 = sphi 0, %s254
      %s271 = sphi 0, %s255
      %s277 = sphi 0, %s279
      %s280 = sphi 0, %s277
      %s281 = sphi 0, %s280
      %s297 = sphi 0, %s281
    $region4: #{ffnn_forward.1} parent=1 // loop_header_branch
      %24 = sbr.rel (%p22) target = $region8
    $region5: #{ffnn_forward.1} parent=1 // loop_body
      %s26 = ssub.s32 %s21, 1
      %s27 = ssub.s32 %s21, 2
      %s28 = sadd.s32 %s21, 1
      %s29 = ssub.s32 %s21, %s28
      %p30 = scmp.eq.s32.totalorder %s29, 0
      %s32 = sadd.s32 %s31, 1
      %s33 = scalar_select %p30, %s31, %s32
      %p36 = pneg %p30
      %p37 = scmp.eq.s32.totalorder %s21, 1
      %p38 = por %p36, %p37
      %p39 = scmp.ne.s32.totalorder %s31, %s34
      %p40 = scmp.eq.s32.totalorder %s21, 0
      %p41 = por %p39, %p40
      %p42 = scmp.ne.s32.totalorder %s31, %s34
      %p43 = scmp.eq.s32.totalorder %s26, 1
      %p44 = por %p42, %p43
      %p45 = scmp.ne.s32.totalorder %s34, %s35
      %p46 = scmp.eq.s32.totalorder %s26, 0
      %p47 = por %p45, %p46
      %p48 = scmp.ne.s32.totalorder %s34, %s35
      %p49 = scmp.eq.s32.totalorder %s27, 1
      %p50 = por %p48, %p49
      %p52 = scmp.ne.s32.totalorder %s35, %s51
      %p53 = scmp.eq.s32.totalorder %s27, 0
      %p54 = por %p52, %p53
      %s55 = ssub.s32 %s21, %s28
      %p56 = scmp.eq.s32.totalorder %s55, 0
      %s58 = sadd.s32 %s57, 1
      %s59 = scalar_select %p56, %s57, %s58
      %p62 = pneg %p56
      %p63 = scmp.eq.s32.totalorder %s21, 1
      %p64 = por %p62, %p63
      %p65 = scmp.ne.s32.totalorder %s57, %s60
      %p66 = scmp.eq.s32.totalorder %s21, 0
      %p67 = por %p65, %p66
      %p68 = scmp.ne.s32.totalorder %s57, %s60
      %p69 = scmp.eq.s32.totalorder %s26, 1
      %p70 = por %p68, %p69
      %p71 = scmp.ne.s32.totalorder %s60, %s61
      %p72 = scmp.eq.s32.totalorder %s26, 0
      %p73 = por %p71, %p72
      %p74 = scmp.ne.s32.totalorder %s60, %s61
      %p75 = scmp.eq.s32.totalorder %s27, 1
      %p76 = por %p74, %p75
      %p78 = scmp.ne.s32.totalorder %s61, %s77
      %p79 = scmp.eq.s32.totalorder %s27, 0
      %p80 = por %p78, %p79
      %s82 = sadd.s32 %s81, 1
      %p85 = scmp.eq.s32.totalorder %s21, 1
      %p86 = scmp.ne.s32.totalorder %s81, %s83
      %p87 = scmp.eq.s32.totalorder %s21, 0
      %p88 = por %p86, %p87
      %p89 = scmp.ne.s32.totalorder %s81, %s83
      %p90 = scmp.eq.s32.totalorder %s26, 1
      %p91 = por %p89, %p90
      %p92 = scmp.ne.s32.totalorder %s83, %s84
      %p93 = scmp.eq.s32.totalorder %s26, 0
      %p94 = por %p92, %p93
      %p95 = scmp.ne.s32.totalorder %s83, %s84
      %p96 = scmp.eq.s32.totalorder %s27, 1
      %p97 = por %p95, %p96
      %p99 = scmp.ne.s32.totalorder %s84, %s98
      %p100 = scmp.eq.s32.totalorder %s27, 0
      %p101 = por %p99, %p100
      %s103 = sadd.s32 %s102, 1
      %p106 = scmp.eq.s32.totalorder %s21, 1
      %p107 = scmp.ne.s32.totalorder %s102, %s104
      %p108 = scmp.eq.s32.totalorder %s21, 0
      %p109 = por %p107, %p108
      %p110 = scmp.ne.s32.totalorder %s102, %s104
      %p111 = scmp.eq.s32.totalorder %s26, 1
      %p112 = por %p110, %p111
      %p113 = scmp.ne.s32.totalorder %s104, %s105
      %p114 = scmp.eq.s32.totalorder %s26, 0
      %p115 = por %p113, %p114
      %p116 = scmp.ne.s32.totalorder %s104, %s105
      %p117 = scmp.eq.s32.totalorder %s27, 1
      %p118 = por %p116, %p117
      %p120 = scmp.ne.s32.totalorder %s105, %s119
      %p121 = scmp.eq.s32.totalorder %s27, 0
      %p122 = por %p120, %p121
      %s124 = sadd.s32 %s123, 1
      %p127 = scmp.eq.s32.totalorder %s21, 1
      %p128 = scmp.ne.s32.totalorder %s123, %s125
      %p129 = scmp.eq.s32.totalorder %s21, 0
      %p130 = por %p128, %p129
      %p131 = scmp.ne.s32.totalorder %s123, %s125
      %p132 = scmp.eq.s32.totalorder %s26, 1
      %p133 = por %p131, %p132
      %p134 = scmp.ne.s32.totalorder %s125, %s126
      %p135 = scmp.eq.s32.totalorder %s26, 0
      %p136 = por %p134, %p135
      %p137 = scmp.ne.s32.totalorder %s125, %s126
      %p138 = scmp.eq.s32.totalorder %s27, 1
      %p139 = por %p137, %p138
      %p141 = scmp.ne.s32.totalorder %s126, %s140
      %p142 = scmp.eq.s32.totalorder %s27, 0
      %p143 = por %p141, %p142
      %s145 = sadd.s32 %s144, 1
      %p148 = scmp.eq.s32.totalorder %s21, 1
      %p149 = scmp.ne.s32.totalorder %s144, %s146
      %p150 = scmp.eq.s32.totalorder %s21, 0
      %p151 = por %p149, %p150
      %p152 = scmp.ne.s32.totalorder %s144, %s146
      %p153 = scmp.eq.s32.totalorder %s26, 1
      %p154 = por %p152, %p153
      %p155 = scmp.ne.s32.totalorder %s146, %s147
      %p156 = scmp.eq.s32.totalorder %s26, 0
      %p157 = por %p155, %p156
      %p158 = scmp.ne.s32.totalorder %s146, %s147
      %p159 = scmp.eq.s32.totalorder %s27, 1
      %p160 = por %p158, %p159
      %p162 = scmp.ne.s32.totalorder %s147, %s161
      %p163 = scmp.eq.s32.totalorder %s27, 0
      %p164 = por %p162, %p163
      %s166 = sadd.s32 %s165, 1
      %p169 = scmp.eq.s32.totalorder %s21, 1
      %p170 = scmp.ne.s32.totalorder %s165, %s167
      %p171 = scmp.eq.s32.totalorder %s21, 0
      %p172 = por %p170, %p171
      %p173 = scmp.ne.s32.totalorder %s165, %s167
      %p174 = scmp.eq.s32.totalorder %s26, 1
      %p175 = por %p173, %p174
      %p176 = scmp.ne.s32.totalorder %s167, %s168
      %p177 = scmp.eq.s32.totalorder %s26, 0
      %p178 = por %p176, %p177
      %p179 = scmp.ne.s32.totalorder %s167, %s168
      %p180 = scmp.eq.s32.totalorder %s27, 1
      %p181 = por %p179, %p180
      %p183 = scmp.ne.s32.totalorder %s168, %s182
      %p184 = scmp.eq.s32.totalorder %s27, 0
      %p185 = por %p183, %p184
      %s187 = sadd.s32 %s186, 1
      %p190 = scmp.eq.s32.totalorder %s21, 1
      %p191 = scmp.ne.s32.totalorder %s186, %s188
      %p192 = scmp.eq.s32.totalorder %s21, 0
      %p193 = por %p191, %p192
      %p194 = scmp.ne.s32.totalorder %s186, %s188
      %p195 = scmp.eq.s32.totalorder %s26, 1
      %p196 = por %p194, %p195
      %p197 = scmp.ne.s32.totalorder %s188, %s189
      %p198 = scmp.eq.s32.totalorder %s26, 0
      %p199 = por %p197, %p198
      %p200 = scmp.ne.s32.totalorder %s188, %s189
      %p201 = scmp.eq.s32.totalorder %s27, 1
      %p202 = por %p200, %p201
      %p204 = scmp.ne.s32.totalorder %s189, %s203
      %p205 = scmp.eq.s32.totalorder %s27, 0
      %p206 = por %p204, %p205
      %s208 = sadd.s32 %s207, 1
      %p211 = scmp.eq.s32.totalorder %s21, 1
      %p212 = scmp.ne.s32.totalorder %s207, %s209
      %p213 = scmp.eq.s32.totalorder %s21, 0
      %p214 = por %p212, %p213
      %p215 = scmp.ne.s32.totalorder %s207, %s209
      %p216 = scmp.eq.s32.totalorder %s26, 1
      %p217 = por %p215, %p216
      %p218 = scmp.ne.s32.totalorder %s209, %s210
      %p219 = scmp.eq.s32.totalorder %s26, 0
      %p220 = por %p218, %p219
      %p221 = scmp.ne.s32.totalorder %s209, %s210
      %p222 = scmp.eq.s32.totalorder %s27, 1
      %p223 = por %p221, %p222
      %p225 = scmp.ne.s32.totalorder %s210, %s224
      %p226 = scmp.eq.s32.totalorder %s27, 0
      %p227 = por %p225, %p226
      %s229 = sadd.s32 %s228, 1
      %p232 = scmp.eq.s32.totalorder %s21, 1
      %p233 = scmp.ne.s32.totalorder %s228, %s230
      %p234 = scmp.eq.s32.totalorder %s21, 0
      %p235 = por %p233, %p234
      %p236 = scmp.ne.s32.totalorder %s228, %s230
      %p237 = scmp.eq.s32.totalorder %s26, 1
      %p238 = por %p236, %p237
      %p239 = scmp.ne.s32.totalorder %s230, %s231
      %p240 = scmp.eq.s32.totalorder %s26, 0
      %p241 = por %p239, %p240
      %p242 = scmp.ne.s32.totalorder %s230, %s231
      %p243 = scmp.eq.s32.totalorder %s27, 1
      %p244 = por %p242, %p243
      %p246 = scmp.ne.s32.totalorder %s231, %s245
      %p247 = scmp.eq.s32.totalorder %s27, 0
      %p248 = por %p246, %p247
      %s249 = ssub.s32 %s21, %s28
      %p250 = scmp.eq.s32.totalorder %s249, 0
      %s252 = sadd.s32 %s251, 1
      %s253 = scalar_select %p250, %s251, %s252
      %p256 = pneg %p250
      %p257 = scmp.eq.s32.totalorder %s21, 1
      %p258 = por %p256, %p257
      %p259 = scmp.ne.s32.totalorder %s251, %s254
      %p260 = scmp.eq.s32.totalorder %s21, 0
      %p261 = por %p259, %p260
      %p262 = scmp.ne.s32.totalorder %s251, %s254
      %p263 = scmp.eq.s32.totalorder %s26, 1
      %p264 = por %p262, %p263
      %p265 = scmp.ne.s32.totalorder %s254, %s255
      %p266 = scmp.eq.s32.totalorder %s26, 0
      %p267 = por %p265, %p266
      %p268 = scmp.ne.s32.totalorder %s254, %s255
      %p269 = scmp.eq.s32.totalorder %s27, 1
      %p270 = por %p268, %p269
      %p272 = scmp.ne.s32.totalorder %s255, %s271
      %p273 = scmp.eq.s32.totalorder %s27, 0
      %p274 = por %p272, %p273
      %s275 = ssub.s32 %s21, %s28
      %p276 = scmp.eq.s32.totalorder %s275, 0
      %s278 = sadd.s32 %s277, 1
      %s279 = scalar_select %p276, %s277, %s278
      %p282 = pneg %p276
      %p283 = scmp.eq.s32.totalorder %s21, 1
      %p284 = por %p282, %p283
      %p285 = scmp.ne.s32.totalorder %s277, %s280
      %p286 = scmp.eq.s32.totalorder %s21, 0
      %p287 = por %p285, %p286
      %p288 = scmp.ne.s32.totalorder %s277, %s280
      %p289 = scmp.eq.s32.totalorder %s26, 1
      %p290 = por %p288, %p289
      %p291 = scmp.ne.s32.totalorder %s280, %s281
      %p292 = scmp.eq.s32.totalorder %s26, 0
      %p293 = por %p291, %p292
      %p294 = scmp.ne.s32.totalorder %s280, %s281
      %p295 = scmp.eq.s32.totalorder %s27, 1
      %p296 = por %p294, %p295
      %p298 = scmp.ne.s32.totalorder %s281, %s297
      %p299 = scmp.eq.s32.totalorder %s27, 0
      %p300 = por %p298, %p299
      %p301 = scmp.le.s32.totalorder 1, %s21
      %p302 = scmp.lt.s32.totalorder %s21, 3
      %p303 = pnand %p301, %p302
      %p304 = pneg %p303
      // Predicated region
      $region9: #{ffnn_forward.1} parent=5 // pred_check
        _
      $region10: #{ffnn_forward.1} parent=5 // pred_check_branch
        %306 = sbr.rel (%p303) target = $region12
      $region11: #{ffnn_forward.1} parent=5 // pred_region
        %s307 = ssub.s32 %s21, 1
        // Predicated region
        $region13: #{ffnn_forward.1} parent=11 // pred_check
          %p308 = pneg %p94
        $region14: #{ffnn_forward.1} parent=11 // pred_check_branch
          %310 = sbr.rel (%p308) target = $region16
        $region15: #{ffnn_forward.1} parent=11 // pred_region
          _
        $region16: #{ffnn_forward.1} parent=11 // pred_fallthru
          _
        // Predicated region
        $region17: #{ffnn_forward.1} parent=11 // pred_check
          %p311 = pneg %p115
        $region18: #{ffnn_forward.1} parent=11 // pred_check_branch
          %313 = sbr.rel (%p311) target = $region20
        $region19: #{ffnn_forward.1} parent=11 // pred_region
          _
        $region20: #{ffnn_forward.1} parent=11 // pred_fallthru
          _
        // Predicated region
        $region21: #{ffnn_forward.1} parent=11 // pred_check
          %p314 = pneg %p136
        $region22: #{ffnn_forward.1} parent=11 // pred_check_branch
          %316 = sbr.rel (%p314) target = $region24
        $region23: #{ffnn_forward.1} parent=11 // pred_region
          _
        $region24: #{ffnn_forward.1} parent=11 // pred_fallthru
          _
        // Predicated region
        $region25: #{ffnn_forward.1} parent=11 // pred_check
          %p317 = pneg %p157
        $region26: #{ffnn_forward.1} parent=11 // pred_check_branch
          %319 = sbr.rel (%p317) target = $region28
        $region27: #{ffnn_forward.1} parent=11 // pred_region
          _
        $region28: #{ffnn_forward.1} parent=11 // pred_fallthru
          _
        // Predicated region
        $region29: #{ffnn_forward.1} parent=11 // pred_check
          %p320 = pneg %p178
        $region30: #{ffnn_forward.1} parent=11 // pred_check_branch
          %322 = sbr.rel (%p320) target = $region32
        $region31: #{ffnn_forward.1} parent=11 // pred_region
          _
        $region32: #{ffnn_forward.1} parent=11 // pred_fallthru
          _
        // Predicated region
        $region33: #{ffnn_forward.1} parent=11 // pred_check
          %p323 = pneg %p199
        $region34: #{ffnn_forward.1} parent=11 // pred_check_branch
          %325 = sbr.rel (%p323) target = $region36
        $region35: #{ffnn_forward.1} parent=11 // pred_region
          _
        $region36: #{ffnn_forward.1} parent=11 // pred_fallthru
          _
        // Predicated region
        $region37: #{ffnn_forward.1} parent=11 // pred_check
          %p326 = pneg %p220
        $region38: #{ffnn_forward.1} parent=11 // pred_check_branch
          %328 = sbr.rel (%p326) target = $region40
        $region39: #{ffnn_forward.1} parent=11 // pred_region
          _
        $region40: #{ffnn_forward.1} parent=11 // pred_fallthru
          _
        // Predicated region
        $region41: #{ffnn_forward.1} parent=11 // pred_check
          %p329 = pneg %p241
        $region42: #{ffnn_forward.1} parent=11 // pred_check_branch
          %331 = sbr.rel (%p329) target = $region44
        $region43: #{ffnn_forward.1} parent=11 // pred_region
          _
        $region44: #{ffnn_forward.1} parent=11 // pred_fallthru
          _
      $region12: #{ffnn_forward.1} parent=5 // pred_fallthru
        _
      %p332 = scmp.lt.s32.totalorder %s21, 2
      // Predicated region
      $region45: #{ffnn_forward.1} parent=5 // pred_check
        %p333 = pneg %p332
      $region46: #{ffnn_forward.1} parent=5 // pred_check_branch
        %335 = sbr.rel (%p333) target = $region48
      $region47: #{ffnn_forward.1} parent=5 // pred_region
        // Predicated region
        $region49: #{ffnn_forward.1} parent=47 // pred_check
          %p336 = pneg %p41
        $region50: #{ffnn_forward.1} parent=47 // pred_check_branch
          %338 = sbr.rel (%p336) target = $region52
        $region51: #{ffnn_forward.1} parent=47 // pred_region
          %s339 = sand.u32 %s31, 1
          %s340 = sand.u32 %s31, 1
          %s341 = smul.addr %s340, 64
          %s342 = scalar_lea.vmem [#allocation2], %s341
          %s343 = smul.u32 4, %s21
          %s344 = smul.addr %s343, 8
          %s345 = scalar_lea.vmem %s0, %s344
          // Predicated region
          $region53: #{ffnn_forward.1} parent=51 // pred_check
            _
          $region54: #{ffnn_forward.1} parent=51 // pred_check_branch
            %347 = sbr.rel (0) target = $region56
          $region55: #{ffnn_forward.1} parent=51 // pred_region
            // Predicated region
            $region57: #{ffnn_forward.1} parent=55 // pred_check
              _
            $region58: #{ffnn_forward.1} parent=55 // pred_check_branch
              %349 = sbr.rel (0) target = $region60
            $region59: #{ffnn_forward.1} parent=55 // pred_region
              loop: start=0, step=1, limit=1
              $region61: #{ffnn_forward.1} parent=59 // loop_pre_header
                _
              $region62: #{ffnn_forward.1} parent=59 // loop_header
                %s351 = sphi 0, %s355
                %p352 = scmp.ge.s32.totalorder %s351, 1
                %s356 = sphi %s345, %s345
                %s357 = sphi %s342, %s342
              $region63: #{ffnn_forward.1} parent=59 // loop_header_branch
                %354 = sbr.rel (%p352) target = $region67
              $region64: #{ffnn_forward.1} parent=59 // loop_body
                %v358 = vld [vmem:[%s356] sm:$0xff]
                %359 = vst [vmem:[%s357] sm:$0xff] %v358
                %v360 = vld [vmem:[%s356 + $0x8] sm:$0xff]
                %361 = vst [vmem:[%s357 + $0x8] sm:$0xff] %v360
                %v362 = vld [vmem:[%s356 + $0x10] sm:$0xff]
                %363 = vst [vmem:[%s357 + $0x10] sm:$0xff] %v362
                %v364 = vld [vmem:[%s356 + $0x18] sm:$0xff]
                %365 = vst [vmem:[%s357 + $0x18] sm:$0xff] %v364
                %v366 = vld [vmem:[%s356 + $0x40] sm:$0xff]
                %367 = vst [vmem:[%s357 + $0x20] sm:$0xff] %v366
                %v368 = vld [vmem:[%s356 + $0x48] sm:$0xff]
                %369 = vst [vmem:[%s357 + $0x28] sm:$0xff] %v368
                %v370 = vld [vmem:[%s356 + $0x50] sm:$0xff]
                %371 = vst [vmem:[%s357 + $0x30] sm:$0xff] %v370
                %v372 = vld [vmem:[%s356 + $0x58] sm:$0xff]
                %373 = vst [vmem:[%s357 + $0x38] sm:$0xff] %v372
              $region65: #{ffnn_forward.1} parent=59 // loop_footer
                %s355 = sadd.s32 1, %s351
              $region66: #{ffnn_forward.1} parent=59 // loop_footer_branch
                %350 = sbr.rel target = $region62
              $region67: #{ffnn_forward.1} parent=59 // loop_exit
                _
            $region60: #{ffnn_forward.1} parent=55 // pred_fallthru
              _
            // Predicated region
            $region68: #{ffnn_forward.1} parent=55 // pred_check
              _
            $region69: #{ffnn_forward.1} parent=55 // pred_check_branch
              %375 = sbr.rel target = $region71
            $region70: #{ffnn_forward.1} parent=55 // pred_region
              _
            $region71: #{ffnn_forward.1} parent=55 // pred_fallthru
              _
          $region56: #{ffnn_forward.1} parent=51 // pred_fallthru
            _
          %376 = vnop
        $region52: #{ffnn_forward.1} parent=47 // pred_fallthru
          _
        // Predicated region
        $region72: #{ffnn_forward.1} parent=47 // pred_check
          %p377 = pneg %p67
        $region73: #{ffnn_forward.1} parent=47 // pred_check_branch
          %379 = sbr.rel (%p377) target = $region75
        $region74: #{ffnn_forward.1} parent=47 // pred_region
          %s380 = sand.u32 %s57, 1
          %s381 = sand.u32 %s57, 1
          %s382 = smul.addr %s381, 64
          %s383 = scalar_lea.vmem [#allocation3], %s382
          %s384 = smul.u32 4, %s21
          %s385 = smul.addr %s384, 8
          %s386 = scalar_lea.vmem %s1, %s385
          // Predicated region
          $region76: #{ffnn_forward.1} parent=74 // pred_check
            _
          $region77: #{ffnn_forward.1} parent=74 // pred_check_branch
            %388 = sbr.rel (0) target = $region79
          $region78: #{ffnn_forward.1} parent=74 // pred_region
            // Predicated region
            $region80: #{ffnn_forward.1} parent=78 // pred_check
              _
            $region81: #{ffnn_forward.1} parent=78 // pred_check_branch
              %390 = sbr.rel (0) target = $region83
            $region82: #{ffnn_forward.1} parent=78 // pred_region
              loop: start=0, step=1, limit=1
              $region84: #{ffnn_forward.1} parent=82 // loop_pre_header
                _
              $region85: #{ffnn_forward.1} parent=82 // loop_header
                %s392 = sphi 0, %s396
                %p393 = scmp.ge.s32.totalorder %s392, 1
                %s397 = sphi %s386, %s386
                %s398 = sphi %s383, %s383
              $region86: #{ffnn_forward.1} parent=82 // loop_header_branch
                %395 = sbr.rel (%p393) target = $region90
              $region87: #{ffnn_forward.1} parent=82 // loop_body
                %v399 = vld [vmem:[%s397] sm:$0xff]
                %400 = vst [vmem:[%s398] sm:$0xff] %v399
                %v401 = vld [vmem:[%s397 + $0x8] sm:$0xff]
                %402 = vst [vmem:[%s398 + $0x8] sm:$0xff] %v401
                %v403 = vld [vmem:[%s397 + $0x10] sm:$0xff]
                %404 = vst [vmem:[%s398 + $0x10] sm:$0xff] %v403
                %v405 = vld [vmem:[%s397 + $0x18] sm:$0xff]
                %406 = vst [vmem:[%s398 + $0x18] sm:$0xff] %v405
                %v407 = vld [vmem:[%s397 + $0x40] sm:$0xff]
                %408 = vst [vmem:[%s398 + $0x20] sm:$0xff] %v407
                %v409 = vld [vmem:[%s397 + $0x48] sm:$0xff]
                %410 = vst [vmem:[%s398 + $0x28] sm:$0xff] %v409
                %v411 = vld [vmem:[%s397 + $0x50] sm:$0xff]
                %412 = vst [vmem:[%s398 + $0x30] sm:$0xff] %v411
                %v413 = vld [vmem:[%s397 + $0x58] sm:$0xff]
                %414 = vst [vmem:[%s398 + $0x38] sm:$0xff] %v413
              $region88: #{ffnn_forward.1} parent=82 // loop_footer
                %s396 = sadd.s32 1, %s392
              $region89: #{ffnn_forward.1} parent=82 // loop_footer_branch
                %391 = sbr.rel target = $region85
              $region90: #{ffnn_forward.1} parent=82 // loop_exit
                _
            $region83: #{ffnn_forward.1} parent=78 // pred_fallthru
              _
            // Predicated region
            $region91: #{ffnn_forward.1} parent=78 // pred_check
              _
            $region92: #{ffnn_forward.1} parent=78 // pred_check_branch
              %416 = sbr.rel target = $region94
            $region93: #{ffnn_forward.1} parent=78 // pred_region
              _
            $region94: #{ffnn_forward.1} parent=78 // pred_fallthru
              _
          $region79: #{ffnn_forward.1} parent=74 // pred_fallthru
            _
          %417 = vnop
        $region75: #{ffnn_forward.1} parent=47 // pred_fallthru
          _
      $region48: #{ffnn_forward.1} parent=5 // pred_fallthru
        _
      %p418 = scmp.le.s32.totalorder 1, %s21
      %p419 = scmp.lt.s32.totalorder %s21, 3
      %p420 = pnand %p418, %p419
      %p421 = pneg %p420
      // Predicated region
      $region95: #{ffnn_forward.1} parent=5 // pred_check
        _
      $region96: #{ffnn_forward.1} parent=5 // pred_check_branch
        %423 = sbr.rel (%p420) target = $region98
      $region97: #{ffnn_forward.1} parent=5 // pred_region
        %s424 = ssub.s32 %s21, 1
        %s425 = sand.u32 %s34, 1
        %s426 = sand.u32 %s34, 1
        %s427 = smul.addr %s426, 64
        %s428 = scalar_lea.vmem [#allocation2], %s427
        // Predicated region
        $region99: #{ffnn_forward.1} parent=97 // pred_check
          %p429 = pneg %p47
        $region100: #{ffnn_forward.1} parent=97 // pred_check_branch
          %431 = sbr.rel (%p429) target = $region102
        $region101: #{ffnn_forward.1} parent=97 // pred_region
          _
        $region102: #{ffnn_forward.1} parent=97 // pred_fallthru
          _
        %s432 = sand.u32 %s60, 1
        %s433 = sand.u32 %s60, 1
        %s434 = smul.addr %s433, 64
        %s435 = scalar_lea.vmem [#allocation3], %s434
        // Predicated region
        $region103: #{ffnn_forward.1} parent=97 // pred_check
          %p436 = pneg %p73
        $region104: #{ffnn_forward.1} parent=97 // pred_check_branch
          %438 = sbr.rel (%p436) target = $region106
        $region105: #{ffnn_forward.1} parent=97 // pred_region
          _
        $region106: #{ffnn_forward.1} parent=97 // pred_fallthru
          _
        %s439 = sand.u32 %s34, 1
        %s440 = sand.u32 %s34, 1
        %s441 = smul.addr %s440, 64
        %s442 = scalar_lea.vmem [#allocation2], %s441
        %p443 = pneg %p47
        %p444 = pneg %p44
        %s445 = sand.u32 %s60, 1
        %s446 = sand.u32 %s60, 1
        %s447 = smul.addr %s446, 64
        %s448 = scalar_lea.vmem [#allocation3], %s447
        %p449 = pneg %p73
        %p450 = pneg %p70
        %p451 = pneg %p94
        %p452 = pneg %p91
        %p453 = pneg %p115
        %p454 = pneg %p112
        %p455 = pneg %p136
        %p456 = pneg %p133
        %p457 = pneg %p157
        %p458 = pneg %p154
        %p459 = pneg %p178
        %p460 = pneg %p175
        %p461 = pneg %p199
        %p462 = pneg %p196
        %p463 = pneg %p220
        %p464 = pneg %p217
        %p465 = pneg %p241
        %p466 = pneg %p238
        %p467 = pneg %p267
        %p468 = pneg %p264
        %s469 = sand.u32 %s254, 1
        %s470 = scalar_lea.sflag [#allocation5], %s469
        %s471 = sand.u32 %s254, 1
        %s472 = smul.addr %s471, 64
        %s473 = scalar_lea.vmem [#allocation4], %s472
        %p474 = pneg %p293
        %p475 = pneg %p290
        %p476 = scmp.lt.s32.totalorder %s26, 1
        %s477 = scalar_select %p476, %s26, 1
        %s478 = smul.addr %s477, 8
        %s479 = scalar_lea.vmem %s11, %s478
        %s480 = smul.u32 4, %s26
        %s481 = smul.u32 4, %s26
        %s482 = smul.u32 4, %s26
        %p483 = scmp.lt.s32.totalorder %s26, 1
        %s484 = scalar_select %p483, %s26, 1
        %s485 = smul.addr %s484, 8
        %s486 = scalar_lea.vmem %s11, %s485
        %v487 = vld [vmem:[%s428] sm:$0xff]
        %v488 = vld [vmem:[%s428 + $0x8] sm:$0xff]
        %v489 = vld [vmem:[%s428 + $0x10] sm:$0xff]
        %v490 = vld [vmem:[%s428 + $0x18] sm:$0xff]
        %v491 = vld [vmem:[%s428 + $0x20] sm:$0xff]
        %v492 = vld [vmem:[%s428 + $0x28] sm:$0xff]
        %v493 = vld [vmem:[%s428 + $0x30] sm:$0xff]
        %v494 = vld [vmem:[%s428 + $0x38] sm:$0xff]
        %v495 = vld [vmem:[%s2] sm:$0xff]
        %v496 = vld [vmem:[%s2 + $0x8] sm:$0xff]
        %v497 = vld [vmem:[%s2 + $0x10] sm:$0xff]
        %v498 = vld [vmem:[%s2 + $0x18] sm:$0xff]
        %v499 = vld [vmem:[%s3] sm:$0xff]
        %v500 = vld [vmem:[%s3 + $0x8] sm:$0xff]
        %v501 = vld [vmem:[%s3 + $0x10] sm:$0xff]
        %v502 = vld [vmem:[%s3 + $0x18] sm:$0xff]
        %504 = vset.pattern.permute.xlu0 0
        %505 = vperm.xlu0 %504, %v499
        %v506 = vpop.permute.xlu0 %505
        %509 = vset.pattern.permute.xlu0 0
        %510 = vperm.xlu0 %509, %v500
        %v511 = vpop.permute.xlu0 %510
        %514 = vset.pattern.permute.xlu0 0
        %515 = vperm.xlu0 %514, %v501
        %v516 = vpop.permute.xlu0 %515
        %519 = vset.pattern.permute.xlu0 0
        %520 = vperm.xlu0 %519, %v502
        %v521 = vpop.permute.xlu0 %520
        %vm523 = vcmask 130048
        %v525 = vsel %vm523, %v495, 0
        %v528 = vsel %vm523, %v496, 0
        %v531 = vsel %vm523, %v497, 0
        %v534 = vsel %vm523, %v498, 0
        %536 = vmatprep.subr.mxu0 %v488
        %537 = vmatpush1.msra.mxu0 %v487
        %538 = vmatprep.subr.mxu0 %v492
        %539 = vmatpush1.msra.mxu0 %v491
        %540 = vmatprep.subr.mxu0 0.0
        %541 = vmatpush1.msra.mxu0 0.0
        %542 = vmatprep.subr.mxu0 0.0
        %543 = vmatpush1.msra.mxu0 0.0
        %544 = vmatprep.subr.mxu0 0.0
        %545 = vmatpush1.msra.mxu0 0.0
        %546 = vmatprep.subr.mxu0 0.0
        %547 = vmatpush1.msra.mxu0 0.0
        %548 = vmatprep.subr.mxu0 0.0
        %549 = vmatpush1.msra.mxu0 0.0
        %550 = vmatprep.subr.mxu0 0.0
        %551 = vmatpush1.msra.mxu0 0.0
        %552 = vmatprep.subr.mxu0 0.0
        %553 = vmatpush1.msra.mxu0 0.0
        %554 = vmatprep.subr.mxu0 0.0
        %555 = vmatpush1.msra.mxu0 0.0
        %556 = vmatprep.subr.mxu0 0.0
        %557 = vmatpush1.msra.mxu0 0.0
        %558 = vmatprep.subr.mxu0 0.0
        %559 = vmatpush1.msra.mxu0 0.0
        %560 = vmatprep.subr.mxu0 0.0
        %561 = vmatpush1.msra.mxu0 0.0
        %562 = vmatprep.subr.mxu0 0.0
        %563 = vmatpush1.msra.mxu0 0.0
        %564 = vmatprep.subr.mxu0 0.0
        %565 = vmatpush1.msra.mxu0 0.0
        %566 = vmatprep.subr.mxu0 0.0
        %567 = vmatpush1.msra.mxu0 0.0
        %568 = vmatprep.subr.mxu0 0.0
        %569 = vmatpush1.msra.mxu0 0.0
        %570 = vmatprep.subr.mxu0 0.0
        %571 = vmatpush1.msra.mxu0 0.0
        %572 = vmatprep.subr.mxu0 0.0
        %573 = vmatpush1.msra.mxu0 0.0
        %574 = vmatprep.subr.mxu0 0.0
        %575 = vmatpush1.msra.mxu0 0.0
        %576 = vmatprep.subr.mxu0 0.0
        %577 = vmatpush1.msra.mxu0 0.0
        %578 = vmatprep.subr.mxu0 0.0
        %579 = vmatpush1.msra.mxu0 0.0
        %580 = vmatprep.subr.mxu0 0.0
        %581 = vmatpush1.msra.mxu0 0.0
        %582 = vmatprep.subr.mxu0 0.0
        %583 = vmatpush1.msra.mxu0 0.0
        %584 = vmatprep.subr.mxu0 0.0
        %585 = vmatpush1.msra.mxu0 0.0
        %586 = vmatprep.subr.mxu0 0.0
        %587 = vmatpush1.msra.mxu0 0.0
        %588 = vmatprep.subr.mxu0 0.0
        %589 = vmatpush1.msra.mxu0 0.0
        %590 = vmatprep.subr.mxu0 0.0
        %591 = vmatpush1.msra.mxu0 0.0
        %592 = vmatprep.subr.mxu0 0.0
        %593 = vmatpush1.msra.mxu0 0.0
        %594 = vmatprep.subr.mxu0 0.0
        %595 = vmatpush1.msra.mxu0 0.0
        %596 = vmatprep.subr.mxu0 0.0
        %597 = vmatpush1.msra.mxu0 0.0
        %598 = vmatprep.subr.mxu0 0.0
        %599 = vmatpush1.msra.mxu0 0.0
        %600 = vmatprep.mubr.f32.mxu0 0.0
        %601 = vmatmul.mubr.f32.gmra.mrb[0].mxu0 %v525
        %v602 = vpop.f32.mrb[0].mxu0
        %v603 = vadd.f32 %v506, %v602
        %v604 = vpop.f32.mrb[0].mxu0
        %v605 = vadd.f32 %v506, %v604
        %606 = vmatprep.mubr.f32.mxu0 0.0
        %607 = vmatmul.mubr.f32.gmra.mrb[0].mxu0 %v528
        %v608 = vpop.f32.mrb[0].mxu0
        %v609 = vadd.f32 %v511, %v608
        %v610 = vpop.f32.mrb[0].mxu0
        %v611 = vadd.f32 %v511, %v610
        %612 = vmatprep.mubr.f32.mxu0 0.0
        %613 = vmatmul.mubr.f32.gmra.mrb[0].mxu0 %v531
        %v614 = vpop.f32.mrb[0].mxu0
        %v615 = vadd.f32 %v516, %v614
        %v616 = vpop.f32.mrb[0].mxu0
        %v617 = vadd.f32 %v516, %v616
        %618 = vmatprep.mubr.f32.mxu0 0.0
        %619 = vmatmul.mubr.f32.gmra.mrb[0].mxu0 %v534
        %v620 = vpop.f32.mrb[0].mxu0
        %v621 = vadd.f32 %v521, %v620
        %v622 = vpop.f32.mrb[0].mxu0
        %v623 = vadd.f32 %v521, %v622
        %624 = vdwg.mxu0
        %625 = vmatprep.subr.mxu0 %v490
        %626 = vmatpush1.msra.mxu0 %v489
        %627 = vmatprep.subr.mxu0 %v494
        %628 = vmatpush1.msra.mxu0 %v493
        %629 = vmatprep.subr.mxu0 0.0
        %630 = vmatpush1.msra.mxu0 0.0
        %631 = vmatprep.subr.mxu0 0.0
        %632 = vmatpush1.msra.mxu0 0.0
        %633 = vmatprep.subr.mxu0 0.0
        %634 = vmatpush1.msra.mxu0 0.0
        %635 = vmatprep.subr.mxu0 0.0
        %636 = vmatpush1.msra.mxu0 0.0
        %637 = vmatprep.subr.mxu0 0.0
        %638 = vmatpush1.msra.mxu0 0.0
        %639 = vmatprep.subr.mxu0 0.0
        %640 = vmatpush1.msra.mxu0 0.0
        %641 = vmatprep.subr.mxu0 0.0
        %642 = vmatpush1.msra.mxu0 0.0
        %643 = vmatprep.subr.mxu0 0.0
        %644 = vmatpush1.msra.mxu0 0.0
        %645 = vmatprep.subr.mxu0 0.0
        %646 = vmatpush1.msra.mxu0 0.0
        %647 = vmatprep.subr.mxu0 0.0
        %648 = vmatpush1.msra.mxu0 0.0
        %649 = vmatprep.subr.mxu0 0.0
        %650 = vmatpush1.msra.mxu0 0.0
        %651 = vmatprep.subr.mxu0 0.0
        %652 = vmatpush1.msra.mxu0 0.0
        %653 = vmatprep.subr.mxu0 0.0
        %654 = vmatpush1.msra.mxu0 0.0
        %655 = vmatprep.subr.mxu0 0.0
        %656 = vmatpush1.msra.mxu0 0.0
        %657 = vmatprep.subr.mxu0 0.0
        %658 = vmatpush1.msra.mxu0 0.0
        %659 = vmatprep.subr.mxu0 0.0
        %660 = vmatpush1.msra.mxu0 0.0
        %661 = vmatprep.subr.mxu0 0.0
        %662 = vmatpush1.msra.mxu0 0.0
        %663 = vmatprep.subr.mxu0 0.0
        %664 = vmatpush1.msra.mxu0 0.0
        %665 = vmatprep.subr.mxu0 0.0
        %666 = vmatpush1.msra.mxu0 0.0
        %667 = vmatprep.subr.mxu0 0.0
        %668 = vmatpush1.msra.mxu0 0.0
        %669 = vmatprep.subr.mxu0 0.0
        %670 = vmatpush1.msra.mxu0 0.0
        %671 = vmatprep.subr.mxu0 0.0
        %672 = vmatpush1.msra.mxu0 0.0
        %673 = vmatprep.subr.mxu0 0.0
        %674 = vmatpush1.msra.mxu0 0.0
        %675 = vmatprep.subr.mxu0 0.0
        %676 = vmatpush1.msra.mxu0 0.0
        %677 = vmatprep.subr.mxu0 0.0
        %678 = vmatpush1.msra.mxu0 0.0
        %679 = vmatprep.subr.mxu0 0.0
        %680 = vmatpush1.msra.mxu0 0.0
        %681 = vmatprep.subr.mxu0 0.0
        %682 = vmatpush1.msra.mxu0 0.0
        %683 = vmatprep.subr.mxu0 0.0
        %684 = vmatpush1.msra.mxu0 0.0
        %685 = vmatprep.subr.mxu0 0.0
        %686 = vmatpush1.msra.mxu0 0.0
        %687 = vmatprep.subr.mxu0 0.0
        %688 = vmatpush1.msra.mxu0 0.0
        %689 = vmatprep.mubr.f32.mxu0 0.0
        %690 = vmatmul.mubr.f32.gmra.mrb[0].mxu0 %v525
        %v691 = vpop.f32.mrb[0].mxu0
        %v692 = vadd.f32 %v506, %v691
        %v693 = vpop.f32.mrb[0].mxu0
        %v694 = vadd.f32 %v506, %v693
        %695 = vmatprep.mubr.f32.mxu0 0.0
        %696 = vmatmul.mubr.f32.gmra.mrb[0].mxu0 %v528
        %v697 = vpop.f32.mrb[0].mxu0
        %v698 = vadd.f32 %v511, %v697
        %v699 = vpop.f32.mrb[0].mxu0
        %v700 = vadd.f32 %v511, %v699
        %701 = vmatprep.mubr.f32.mxu0 0.0
        %702 = vmatmul.mubr.f32.gmra.mrb[0].mxu0 %v531
        %v703 = vpop.f32.mrb[0].mxu0
        %v704 = vadd.f32 %v516, %v703
        %v705 = vpop.f32.mrb[0].mxu0
        %v706 = vadd.f32 %v516, %v705
        %707 = vmatprep.mubr.f32.mxu0 0.0
        %708 = vmatmul.mubr.f32.gmra.mrb[0].mxu0 %v534
        %v709 = vpop.f32.mrb[0].mxu0
        %v710 = vadd.f32 %v521, %v709
        %v711 = vpop.f32.mrb[0].mxu0
        %v712 = vadd.f32 %v521, %v711
        %713 = vdwg.mxu0
        %v714 = vmax.f32 %v603, 0.0
        %v715 = vmax.f32 %v605, 0.0
        %v716 = vmax.f32 %v692, 0.0
        %v717 = vmax.f32 %v694, 0.0
        %v718 = vmax.f32 %v609, 0.0
        %v719 = vmax.f32 %v611, 0.0
        %v720 = vmax.f32 %v698, 0.0
        %v721 = vmax.f32 %v700, 0.0
        %v722 = vmax.f32 %v615, 0.0
        %v723 = vmax.f32 %v617, 0.0
        %v724 = vmax.f32 %v704, 0.0
        %v725 = vmax.f32 %v706, 0.0
        %v726 = vmax.f32 %v621, 0.0
        %v727 = vmax.f32 %v623, 0.0
        %v728 = vmax.f32 %v710, 0.0
        %v729 = vmax.f32 %v712, 0.0
        %v730 = vld [vmem:[%s4] sm:$0xff]
        %v731 = vld [vmem:[%s4 + $0x8] sm:$0xff]
        %v732 = vld [vmem:[%s4 + $0x10] sm:$0xff]
        %v733 = vld [vmem:[%s4 + $0x18] sm:$0xff]
        %v734 = vld [vmem:[%s5] sm:$0xff]
        %v735 = vld [vmem:[%s5 + $0x8] sm:$0xff]
        %v736 = vld [vmem:[%s5 + $0x10] sm:$0xff]
        %v737 = vld [vmem:[%s5 + $0x18] sm:$0xff]
        %739 = vset.pattern.permute.xlu0 0
        %740 = vperm.xlu0 %739, %v734
        %v741 = vpop.permute.xlu0 %740
        %744 = vset.pattern.permute.xlu0 0
        %745 = vperm.xlu0 %744, %v735
        %v746 = vpop.permute.xlu0 %745
        %749 = vset.pattern.permute.xlu0 0
        %750 = vperm.xlu0 %749, %v736
        %v751 = vpop.permute.xlu0 %750
        %754 = vset.pattern.permute.xlu0 0
        %755 = vperm.xlu0 %754, %v737
        %v756 = vpop.permute.xlu0 %755
        %vm758 = vcmask 261120
        %v760 = vsel %vm758, %v730, 0
        %v763 = vsel %vm758, %v731, 0
        %v766 = vsel %vm758, %v732, 0
        %v769 = vsel %vm758, %v733, 0
        %771 = vmatprep.subr.mxu0 %v715
        %772 = vmatpush1.msra.mxu0 %v714
        %773 = vmatprep.subr.mxu0 %v719
        %774 = vmatpush1.msra.mxu0 %v718
        %775 = vmatprep.subr.mxu0 %v723
        %776 = vmatpush1.msra.mxu0 %v722
        %777 = vmatprep.subr.mxu0 %v727
        %778 = vmatpush1.msra.mxu0 %v726
        %779 = vmatprep.subr.mxu0 0.0
        %780 = vmatpush1.msra.mxu0 0.0
        %781 = vmatprep.subr.mxu0 0.0
        %782 = vmatpush1.msra.mxu0 0.0
        %783 = vmatprep.subr.mxu0 0.0
        %784 = vmatpush1.msra.mxu0 0.0
        %785 = vmatprep.subr.mxu0 0.0
        %786 = vmatpush1.msra.mxu0 0.0
        %787 = vmatprep.subr.mxu0 0.0
        %788 = vmatpush1.msra.mxu0 0.0
        %789 = vmatprep.subr.mxu0 0.0
        %790 = vmatpush1.msra.mxu0 0.0
        %791 = vmatprep.subr.mxu0 0.0
        %792 = vmatpush1.msra.mxu0 0.0
        %793 = vmatprep.subr.mxu0 0.0
        %794 = vmatpush1.msra.mxu0 0.0
        %795 = vmatprep.subr.mxu0 0.0
        %796 = vmatpush1.msra.mxu0 0.0
        %797 = vmatprep.subr.mxu0 0.0
        %798 = vmatpush1.msra.mxu0 0.0
        %799 = vmatprep.subr.mxu0 0.0
        %800 = vmatpush1.msra.mxu0 0.0
        %801 = vmatprep.subr.mxu0 0.0
        %802 = vmatpush1.msra.mxu0 0.0
        %803 = vmatprep.subr.mxu0 0.0
        %804 = vmatpush1.msra.mxu0 0.0
        %805 = vmatprep.subr.mxu0 0.0
        %806 = vmatpush1.msra.mxu0 0.0
        %807 = vmatprep.subr.mxu0 0.0
        %808 = vmatpush1.msra.mxu0 0.0
        %809 = vmatprep.subr.mxu0 0.0
        %810 = vmatpush1.msra.mxu0 0.0
        %811 = vmatprep.subr.mxu0 0.0
        %812 = vmatpush1.msra.mxu0 0.0
        %813 = vmatprep.subr.mxu0 0.0
        %814 = vmatpush1.msra.mxu0 0.0
        %815 = vmatprep.subr.mxu0 0.0
        %816 = vmatpush1.msra.mxu0 0.0
        %817 = vmatprep.subr.mxu0 0.0
        %818 = vmatpush1.msra.mxu0 0.0
        %819 = vmatprep.subr.mxu0 0.0
        %820 = vmatpush1.msra.mxu0 0.0
        %821 = vmatprep.subr.mxu0 0.0
        %822 = vmatpush1.msra.mxu0 0.0
        %823 = vmatprep.subr.mxu0 0.0
        %824 = vmatpush1.msra.mxu0 0.0
        %825 = vmatprep.subr.mxu0 0.0
        %826 = vmatpush1.msra.mxu0 0.0
        %827 = vmatprep.subr.mxu0 0.0
        %828 = vmatpush1.msra.mxu0 0.0
        %829 = vmatprep.subr.mxu0 0.0
        %830 = vmatpush1.msra.mxu0 0.0
        %831 = vmatprep.subr.mxu0 0.0
        %832 = vmatpush1.msra.mxu0 0.0
        %833 = vmatprep.subr.mxu0 0.0
        %834 = vmatpush1.msra.mxu0 0.0
        %835 = vmatprep.mubr.f32.mxu0 0.0
        %836 = vmatmul.mubr.f32.gmra.mrb[0].mxu0 %v760
        %v837 = vpop.f32.mrb[0].mxu0
        %v838 = vadd.f32 %v741, %v837
        %v839 = vpop.f32.mrb[0].mxu0
        %v840 = vadd.f32 %v741, %v839
        %841 = vmatprep.mubr.f32.mxu0 0.0
        %842 = vmatmul.mubr.f32.gmra.mrb[0].mxu0 %v763
        %v843 = vpop.f32.mrb[0].mxu0
        %v844 = vadd.f32 %v746, %v843
        %v845 = vpop.f32.mrb[0].mxu0
        %v846 = vadd.f32 %v746, %v845
        %847 = vmatprep.mubr.f32.mxu0 0.0
        %848 = vmatmul.mubr.f32.gmra.mrb[0].mxu0 %v766
        %v849 = vpop.f32.mrb[0].mxu0
        %v850 = vadd.f32 %v751, %v849
        %v851 = vpop.f32.mrb[0].mxu0
        %v852 = vadd.f32 %v751, %v851
        %853 = vmatprep.mubr.f32.mxu0 0.0
        %854 = vmatmul.mubr.f32.gmra.mrb[0].mxu0 %v769
        %v855 = vpop.f32.mrb[0].mxu0
        %v856 = vadd.f32 %v756, %v855
        %v857 = vpop.f32.mrb[0].mxu0
        %v858 = vadd.f32 %v756, %v857
        %859 = vdwg.mxu0
        %860 = vmatprep.subr.mxu0 %v717
        %861 = vmatpush1.msra.mxu0 %v716
        %862 = vmatprep.subr.mxu0 %v721
        %863 = vmatpush1.msra.mxu0 %v720
        %864 = vmatprep.subr.mxu0 %v725
        %865 = vmatpush1.msra.mxu0 %v724
        %866 = vmatprep.subr.mxu0 %v729
        %867 = vmatpush1.msra.mxu0 %v728
        %868 = vmatprep.subr.mxu0 0.0
        %869 = vmatpush1.msra.mxu0 0.0
        %870 = vmatprep.subr.mxu0 0.0
        %871 = vmatpush1.msra.mxu0 0.0
        %872 = vmatprep.subr.mxu0 0.0
        %873 = vmatpush1.msra.mxu0 0.0
        %874 = vmatprep.subr.mxu0 0.0
        %875 = vmatpush1.msra.mxu0 0.0
        %876 = vmatprep.subr.mxu0 0.0
        %877 = vmatpush1.msra.mxu0 0.0
        %878 = vmatprep.subr.mxu0 0.0
        %879 = vmatpush1.msra.mxu0 0.0
        %880 = vmatprep.subr.mxu0 0.0
        %881 = vmatpush1.msra.mxu0 0.0
        %882 = vmatprep.subr.mxu0 0.0
        %883 = vmatpush1.msra.mxu0 0.0
        %884 = vmatprep.subr.mxu0 0.0
        %885 = vmatpush1.msra.mxu0 0.0
        %886 = vmatprep.subr.mxu0 0.0
        %887 = vmatpush1.msra.mxu0 0.0
        %888 = vmatprep.subr.mxu0 0.0
        %889 = vmatpush1.msra.mxu0 0.0
        %890 = vmatprep.subr.mxu0 0.0
        %891 = vmatpush1.msra.mxu0 0.0
        %892 = vmatprep.subr.mxu0 0.0
        %893 = vmatpush1.msra.mxu0 0.0
        %894 = vmatprep.subr.mxu0 0.0
        %895 = vmatpush1.msra.mxu0 0.0
        %896 = vmatprep.subr.mxu0 0.0
        %897 = vmatpush1.msra.mxu0 0.0
        %898 = vmatprep.subr.mxu0 0.0
        %899 = vmatpush1.msra.mxu0 0.0
        %900 = vmatprep.subr.mxu0 0.0
        %901 = vmatpush1.msra.mxu0 0.0
        %902 = vmatprep.subr.mxu0 0.0
        %903 = vmatpush1.msra.mxu0 0.0
        %904 = vmatprep.subr.mxu0 0.0
        %905 = vmatpush1.msra.mxu0 0.0
        %906 = vmatprep.subr.mxu0 0.0
        %907 = vmatpush1.msra.mxu0 0.0
        %908 = vmatprep.subr.mxu0 0.0
        %909 = vmatpush1.msra.mxu0 0.0
        %910 = vmatprep.subr.mxu0 0.0
        %911 = vmatpush1.msra.mxu0 0.0
        %912 = vmatprep.subr.mxu0 0.0
        %913 = vmatpush1.msra.mxu0 0.0
        %914 = vmatprep.subr.mxu0 0.0
        %915 = vmatpush1.msra.mxu0 0.0
        %916 = vmatprep.subr.mxu0 0.0
        %917 = vmatpush1.msra.mxu0 0.0
        %918 = vmatprep.subr.mxu0 0.0
        %919 = vmatpush1.msra.mxu0 0.0
        %920 = vmatprep.subr.mxu0 0.0
        %921 = vmatpush1.msra.mxu0 0.0
        %922 = vmatprep.subr.mxu0 0.0
        %923 = vmatpush1.msra.mxu0 0.0
        %924 = vmatprep.mubr.f32.mxu0 0.0
        %925 = vmatmul.mubr.f32.gmra.mrb[0].mxu0 %v760
        %v926 = vpop.f32.mrb[0].mxu0
        %v927 = vadd.f32 %v741, %v926
        %v928 = vpop.f32.mrb[0].mxu0
        %v929 = vadd.f32 %v741, %v928
        %930 = vmatprep.mubr.f32.mxu0 0.0
        %931 = vmatmul.mubr.f32.gmra.mrb[0].mxu0 %v763
        %v932 = vpop.f32.mrb[0].mxu0
        %v933 = vadd.f32 %v746, %v932
        %v934 = vpop.f32.mrb[0].mxu0
        %v935 = vadd.f32 %v746, %v934
        %936 = vmatprep.mubr.f32.mxu0 0.0
        %937 = vmatmul.mubr.f32.gmra.mrb[0].mxu0 %v766
        %v938 = vpop.f32.mrb[0].mxu0
        %v939 = vadd.f32 %v751, %v938
        %v940 = vpop.f32.mrb[0].mxu0
        %v941 = vadd.f32 %v751, %v940
        %942 = vmatprep.mubr.f32.mxu0 0.0
        %943 = vmatmul.mubr.f32.gmra.mrb[0].mxu0 %v769
        %v944 = vpop.f32.mrb[0].mxu0
        %v945 = vadd.f32 %v756, %v944
        %v946 = vpop.f32.mrb[0].mxu0
        %v947 = vadd.f32 %v756, %v946
        %948 = vdwg.mxu0
        %v949 = vmax.f32 %v838, 0.0
        %v950 = vmax.f32 %v840, 0.0
        %v951 = vmax.f32 %v927, 0.0
        %v952 = vmax.f32 %v929, 0.0
        %v953 = vmax.f32 %v844, 0.0
        %v954 = vmax.f32 %v846, 0.0
        %v955 = vmax.f32 %v933, 0.0
        %v956 = vmax.f32 %v935, 0.0
        %v957 = vmax.f32 %v850, 0.0
        %v958 = vmax.f32 %v852, 0.0
        %v959 = vmax.f32 %v939, 0.0
        %v960 = vmax.f32 %v941, 0.0
        %v961 = vmax.f32 %v856, 0.0
        %v962 = vmax.f32 %v858, 0.0
        %v963 = vmax.f32 %v945, 0.0
        %v964 = vmax.f32 %v947, 0.0
        %v965 = vld [vmem:[%s6] sm:$0xff]
        %v966 = vld [vmem:[%s6 + $0x8] sm:$0xff]
        %v967 = vld [vmem:[%s6 + $0x10] sm:$0xff]
        %v968 = vld [vmem:[%s6 + $0x18] sm:$0xff]
        %v969 = vld [vmem:[%s7] sm:$0xff]
        %v970 = vld [vmem:[%s7 + $0x8] sm:$0xff]
        %v971 = vld [vmem:[%s7 + $0x10] sm:$0xff]
        %v972 = vld [vmem:[%s7 + $0x18] sm:$0xff]
        %974 = vset.pattern.permute.xlu0 0
        %975 = vperm.xlu0 %974, %v969
        %v976 = vpop.permute.xlu0 %975
        %979 = vset.pattern.permute.xlu0 0
        %980 = vperm.xlu0 %979, %v970
        %v981 = vpop.permute.xlu0 %980
        %984 = vset.pattern.permute.xlu0 0
        %985 = vperm.xlu0 %984, %v971
        %v986 = vpop.permute.xlu0 %985
        %989 = vset.pattern.permute.xlu0 0
        %990 = vperm.xlu0 %989, %v972
        %v991 = vpop.permute.xlu0 %990
        %v994 = vsel %vm758, %v965, 0
        %v997 = vsel %vm758, %v966, 0
        %v1000 = vsel %vm758, %v967, 0
        %v1003 = vsel %vm758, %v968, 0
        %1005 = vmatprep.subr.mxu0 %v950
        %1006 = vmatpush1.msra.mxu0 %v949
        %1007 = vmatprep.subr.mxu0 %v954
        %1008 = vmatpush1.msra.mxu0 %v953
        %1009 = vmatprep.subr.mxu0 %v958
        %1010 = vmatpush1.msra.mxu0 %v957
        %1011 = vmatprep.subr.mxu0 %v962
        %1012 = vmatpush1.msra.mxu0 %v961
        %1013 = vmatprep.subr.mxu0 0.0
        %1014 = vmatpush1.msra.mxu0 0.0
        %1015 = vmatprep.subr.mxu0 0.0
        %1016 = vmatpush1.msra.mxu0 0.0
        %1017 = vmatprep.subr.mxu0 0.0
        %1018 = vmatpush1.msra.mxu0 0.0
        %1019 = vmatprep.subr.mxu0 0.0
        %1020 = vmatpush1.msra.mxu0 0.0
        %1021 = vmatprep.subr.mxu0 0.0
        %1022 = vmatpush1.msra.mxu0 0.0
        %1023 = vmatprep.subr.mxu0 0.0
        %1024 = vmatpush1.msra.mxu0 0.0
        %1025 = vmatprep.subr.mxu0 0.0
        %1026 = vmatpush1.msra.mxu0 0.0
        %1027 = vmatprep.subr.mxu0 0.0
        %1028 = vmatpush1.msra.mxu0 0.0
        %1029 = vmatprep.subr.mxu0 0.0
        %1030 = vmatpush1.msra.mxu0 0.0
        %1031 = vmatprep.subr.mxu0 0.0
        %1032 = vmatpush1.msra.mxu0 0.0
        %1033 = vmatprep.subr.mxu0 0.0
        %1034 = vmatpush1.msra.mxu0 0.0
        %1035 = vmatprep.subr.mxu0 0.0
        %1036 = vmatpush1.msra.mxu0 0.0
        %1037 = vmatprep.subr.mxu0 0.0
        %1038 = vmatpush1.msra.mxu0 0.0
        %1039 = vmatprep.subr.mxu0 0.0
        %1040 = vmatpush1.msra.mxu0 0.0
        %1041 = vmatprep.subr.mxu0 0.0
        %1042 = vmatpush1.msra.mxu0 0.0
        %1043 = vmatprep.subr.mxu0 0.0
        %1044 = vmatpush1.msra.mxu0 0.0
        %1045 = vmatprep.subr.mxu0 0.0
        %1046 = vmatpush1.msra.mxu0 0.0
        %1047 = vmatprep.subr.mxu0 0.0
        %1048 = vmatpush1.msra.mxu0 0.0
        %1049 = vmatprep.subr.mxu0 0.0
        %1050 = vmatpush1.msra.mxu0 0.0
        %1051 = vmatprep.subr.mxu0 0.0
        %1052 = vmatpush1.msra.mxu0 0.0
        %1053 = vmatprep.subr.mxu0 0.0
        %1054 = vmatpush1.msra.mxu0 0.0
        %1055 = vmatprep.subr.mxu0 0.0
        %1056 = vmatpush1.msra.mxu0 0.0
        %1057 = vmatprep.subr.mxu0 0.0
        %1058 = vmatpush1.msra.mxu0 0.0
        %1059 = vmatprep.subr.mxu0 0.0
        %1060 = vmatpush1.msra.mxu0 0.0
        %1061 = vmatprep.subr.mxu0 0.0
        %1062 = vmatpush1.msra.mxu0 0.0
        %1063 = vmatprep.subr.mxu0 0.0
        %1064 = vmatpush1.msra.mxu0 0.0
        %1065 = vmatprep.subr.mxu0 0.0
        %1066 = vmatpush1.msra.mxu0 0.0
        %1067 = vmatprep.subr.mxu0 0.0
        %1068 = vmatpush1.msra.mxu0 0.0
        %1069 = vmatprep.mubr.f32.mxu0 0.0
        %1070 = vmatmul.mubr.f32.gmra.mrb[0].mxu0 %v994
        %v1071 = vpop.f32.mrb[0].mxu0
        %v1072 = vadd.f32 %v976, %v1071
        %v1073 = vpop.f32.mrb[0].mxu0
        %v1074 = vadd.f32 %v976, %v1073
        %1075 = vmatprep.mubr.f32.mxu0 0.0
        %1076 = vmatmul.mubr.f32.gmra.mrb[0].mxu0 %v997
        %v1077 = vpop.f32.mrb[0].mxu0
        %v1078 = vadd.f32 %v981, %v1077
        %v1079 = vpop.f32.mrb[0].mxu0
        %v1080 = vadd.f32 %v981, %v1079
        %1081 = vmatprep.mubr.f32.mxu0 0.0
        %1082 = vmatmul.mubr.f32.gmra.mrb[0].mxu0 %v1000
        %v1083 = vpop.f32.mrb[0].mxu0
        %v1084 = vadd.f32 %v986, %v1083
        %v1085 = vpop.f32.mrb[0].mxu0
        %v1086 = vadd.f32 %v986, %v1085
        %1087 = vmatprep.mubr.f32.mxu0 0.0
        %1088 = vmatmul.mubr.f32.gmra.mrb[0].mxu0 %v1003
        %v1089 = vpop.f32.mrb[0].mxu0
        %v1090 = vadd.f32 %v991, %v1089
        %v1091 = vpop.f32.mrb[0].mxu0
        %v1092 = vadd.f32 %v991, %v1091
        %1093 = vdwg.mxu0
        %1094 = vmatprep.subr.mxu0 %v952
        %1095 = vmatpush1.msra.mxu0 %v951
        %1096 = vmatprep.subr.mxu0 %v956
        %1097 = vmatpush1.msra.mxu0 %v955
        %1098 = vmatprep.subr.mxu0 %v960
        %1099 = vmatpush1.msra.mxu0 %v959
        %1100 = vmatprep.subr.mxu0 %v964
        %1101 = vmatpush1.msra.mxu0 %v963
        %1102 = vmatprep.subr.mxu0 0.0
        %1103 = vmatpush1.msra.mxu0 0.0
        %1104 = vmatprep.subr.mxu0 0.0
        %1105 = vmatpush1.msra.mxu0 0.0
        %1106 = vmatprep.subr.mxu0 0.0
        %1107 = vmatpush1.msra.mxu0 0.0
        %1108 = vmatprep.subr.mxu0 0.0
        %1109 = vmatpush1.msra.mxu0 0.0
        %1110 = vmatprep.subr.mxu0 0.0
        %1111 = vmatpush1.msra.mxu0 0.0
        %1112 = vmatprep.subr.mxu0 0.0
        %1113 = vmatpush1.msra.mxu0 0.0
        %1114 = vmatprep.subr.mxu0 0.0
        %1115 = vmatpush1.msra.mxu0 0.0
        %1116 = vmatprep.subr.mxu0 0.0
        %1117 = vmatpush1.msra.mxu0 0.0
        %1118 = vmatprep.subr.mxu0 0.0
        %1119 = vmatpush1.msra.mxu0 0.0
        %1120 = vmatprep.subr.mxu0 0.0
        %1121 = vmatpush1.msra.mxu0 0.0
        %1122 = vmatprep.subr.mxu0 0.0
        %1123 = vmatpush1.msra.mxu0 0.0
        %1124 = vmatprep.subr.mxu0 0.0
        %1125 = vmatpush1.msra.mxu0 0.0
        %1126 = vmatprep.subr.mxu0 0.0
        %1127 = vmatpush1.msra.mxu0 0.0
        %1128 = vmatprep.subr.mxu0 0.0
        %1129 = vmatpush1.msra.mxu0 0.0
        %1130 = vmatprep.subr.mxu0 0.0
        %1131 = vmatpush1.msra.mxu0 0.0
        %1132 = vmatprep.subr.mxu0 0.0
        %1133 = vmatpush1.msra.mxu0 0.0
        %1134 = vmatprep.subr.mxu0 0.0
        %1135 = vmatpush1.msra.mxu0 0.0
        %1136 = vmatprep.subr.mxu0 0.0
        %1137 = vmatpush1.msra.mxu0 0.0
        %1138 = vmatprep.subr.mxu0 0.0
        %1139 = vmatpush1.msra.mxu0 0.0
        %1140 = vmatprep.subr.mxu0 0.0
        %1141 = vmatpush1.msra.mxu0 0.0
        %1142 = vmatprep.subr.mxu0 0.0
        %1143 = vmatpush1.msra.mxu0 0.0
        %1144 = vmatprep.subr.mxu0 0.0
        %1145 = vmatpush1.msra.mxu0 0.0
        %1146 = vmatprep.subr.mxu0 0.0
        %1147 = vmatpush1.msra.mxu0 0.0
        %1148 = vmatprep.subr.mxu0 0.0
        %1149 = vmatpush1.msra.mxu0 0.0
        %1150 = vmatprep.subr.mxu0 0.0
        %1151 = vmatpush1.msra.mxu0 0.0
        %1152 = vmatprep.subr.mxu0 0.0
        %1153 = vmatpush1.msra.mxu0 0.0
        %1154 = vmatprep.subr.mxu0 0.0
        %1155 = vmatpush1.msra.mxu0 0.0
        %1156 = vmatprep.subr.mxu0 0.0
        %1157 = vmatpush1.msra.mxu0 0.0
        %1158 = vmatprep.mubr.f32.mxu0 0.0
        %1159 = vmatmul.mubr.f32.gmra.mrb[0].mxu0 %v994
        %v1160 = vpop.f32.mrb[0].mxu0
        %v1161 = vadd.f32 %v976, %v1160
        %v1162 = vpop.f32.mrb[0].mxu0
        %v1163 = vadd.f32 %v976, %v1162
        %1164 = vmatprep.mubr.f32.mxu0 0.0
        %1165 = vmatmul.mubr.f32.gmra.mrb[0].mxu0 %v997
        %v1166 = vpop.f32.mrb[0].mxu0
        %v1167 = vadd.f32 %v981, %v1166
        %v1168 = vpop.f32.mrb[0].mxu0
        %v1169 = vadd.f32 %v981, %v1168
        %1170 = vmatprep.mubr.f32.mxu0 0.0
        %1171 = vmatmul.mubr.f32.gmra.mrb[0].mxu0 %v1000
        %v1172 = vpop.f32.mrb[0].mxu0
        %v1173 = vadd.f32 %v986, %v1172
        %v1174 = vpop.f32.mrb[0].mxu0
        %v1175 = vadd.f32 %v986, %v1174
        %1176 = vmatprep.mubr.f32.mxu0 0.0
        %1177 = vmatmul.mubr.f32.gmra.mrb[0].mxu0 %v1003
        %v1178 = vpop.f32.mrb[0].mxu0
        %v1179 = vadd.f32 %v991, %v1178
        %v1180 = vpop.f32.mrb[0].mxu0
        %v1181 = vadd.f32 %v991, %v1180
        %1182 = vdwg.mxu0
        %v1183 = vmax.f32 %v1072, 0.0
        %v1184 = vmax.f32 %v1074, 0.0
        %v1185 = vmax.f32 %v1161, 0.0
        %v1186 = vmax.f32 %v1163, 0.0
        %v1187 = vmax.f32 %v1078, 0.0
        %v1188 = vmax.f32 %v1080, 0.0
        %v1189 = vmax.f32 %v1167, 0.0
        %v1190 = vmax.f32 %v1169, 0.0
        %v1191 = vmax.f32 %v1084, 0.0
        %v1192 = vmax.f32 %v1086, 0.0
        %v1193 = vmax.f32 %v1173, 0.0
        %v1194 = vmax.f32 %v1175, 0.0
        %v1195 = vmax.f32 %v1090, 0.0
        %v1196 = vmax.f32 %v1092, 0.0
        %v1197 = vmax.f32 %v1179, 0.0
        %v1198 = vmax.f32 %v1181, 0.0
        %v1199 = vld [vmem:[%s8] sm:$0xff]
        %v1200 = vld [vmem:[%s8 + $0x8] sm:$0xff]
        %v1201 = vld [vmem:[%s9] sm:$0xff]
        %v1202 = vld [vmem:[%s9 + $0x8] sm:$0xff]
        %1204 = vset.pattern.permute.xlu0 0
        %1205 = vperm.xlu0 %1204, %v1201
        %v1206 = vpop.permute.xlu0 %1205
        %1209 = vset.pattern.permute.xlu0 0
        %1210 = vperm.xlu0 %1209, %v1202
        %v1211 = vpop.permute.xlu0 %1210
        %v1214 = vsel %vm758, %v1199, 0
        %v1217 = vsel %vm758, %v1200, 0
        %1219 = vmatprep.subr.mxu0 %v1184
        %1220 = vmatpush1.msra.mxu0 %v1183
        %1221 = vmatprep.subr.mxu0 %v1188
        %1222 = vmatpush1.msra.mxu0 %v1187
        %1223 = vmatprep.subr.mxu0 %v1192
        %1224 = vmatpush1.msra.mxu0 %v1191
        %1225 = vmatprep.subr.mxu0 %v1196
        %1226 = vmatpush1.msra.mxu0 %v1195
        %1227 = vmatprep.subr.mxu0 0.0
        %1228 = vmatpush1.msra.mxu0 0.0
        %1229 = vmatprep.subr.mxu0 0.0
        %1230 = vmatpush1.msra.mxu0 0.0
        %1231 = vmatprep.subr.mxu0 0.0
        %1232 = vmatpush1.msra.mxu0 0.0
        %1233 = vmatprep.subr.mxu0 0.0
        %1234 = vmatpush1.msra.mxu0 0.0
        %1235 = vmatprep.subr.mxu0 0.0
        %1236 = vmatpush1.msra.mxu0 0.0
        %1237 = vmatprep.subr.mxu0 0.0
        %1238 = vmatpush1.msra.mxu0 0.0
        %1239 = vmatprep.subr.mxu0 0.0
        %1240 = vmatpush1.msra.mxu0 0.0
        %1241 = vmatprep.subr.mxu0 0.0
        %1242 = vmatpush1.msra.mxu0 0.0
        %1243 = vmatprep.subr.mxu0 0.0
        %1244 = vmatpush1.msra.mxu0 0.0
        %1245 = vmatprep.subr.mxu0 0.0
        %1246 = vmatpush1.msra.mxu0 0.0
        %1247 = vmatprep.subr.mxu0 0.0
        %1248 = vmatpush1.msra.mxu0 0.0
        %1249 = vmatprep.subr.mxu0 0.0
        %1250 = vmatpush1.msra.mxu0 0.0
        %1251 = vmatprep.subr.mxu0 0.0
        %1252 = vmatpush1.msra.mxu0 0.0
        %1253 = vmatprep.subr.mxu0 0.0
        %1254 = vmatpush1.msra.mxu0 0.0
        %1255 = vmatprep.subr.mxu0 0.0
        %1256 = vmatpush1.msra.mxu0 0.0
        %1257 = vmatprep.subr.mxu0 0.0
        %1258 = vmatpush1.msra.mxu0 0.0
        %1259 = vmatprep.subr.mxu0 0.0
        %1260 = vmatpush1.msra.mxu0 0.0
        %1261 = vmatprep.subr.mxu0 0.0
        %1262 = vmatpush1.msra.mxu0 0.0
        %1263 = vmatprep.subr.mxu0 0.0
        %1264 = vmatpush1.msra.mxu0 0.0
        %1265 = vmatprep.subr.mxu0 0.0
        %1266 = vmatpush1.msra.mxu0 0.0
        %1267 = vmatprep.subr.mxu0 0.0
        %1268 = vmatpush1.msra.mxu0 0.0
        %1269 = vmatprep.subr.mxu0 0.0
        %1270 = vmatpush1.msra.mxu0 0.0
        %1271 = vmatprep.subr.mxu0 0.0
        %1272 = vmatpush1.msra.mxu0 0.0
        %1273 = vmatprep.subr.mxu0 0.0
        %1274 = vmatpush1.msra.mxu0 0.0
        %1275 = vmatprep.subr.mxu0 0.0
        %1276 = vmatpush1.msra.mxu0 0.0
        %1277 = vmatprep.subr.mxu0 0.0
        %1278 = vmatpush1.msra.mxu0 0.0
        %1279 = vmatprep.subr.mxu0 0.0
        %1280 = vmatpush1.msra.mxu0 0.0
        %1281 = vmatprep.subr.mxu0 0.0
        %1282 = vmatpush1.msra.mxu0 0.0
        %1283 = vmatprep.mubr.f32.mxu0 0.0
        %1284 = vmatmul.mubr.f32.gmra.mrb[0].mxu0 %v1214
        %v1285 = vpop.f32.mrb[0].mxu0
        %v1286 = vadd.f32 %v1206, %v1285
        %v1287 = vpop.f32.mrb[0].mxu0
        %v1288 = vadd.f32 %v1206, %v1287
        %1289 = vmatprep.mubr.f32.mxu0 0.0
        %1290 = vmatmul.mubr.f32.gmra.mrb[0].mxu0 %v1217
        %v1291 = vpop.f32.mrb[0].mxu0
        %v1292 = vadd.f32 %v1211, %v1291
        %v1293 = vpop.f32.mrb[0].mxu0
        %v1294 = vadd.f32 %v1211, %v1293
        %1295 = vdwg.mxu0
        %1296 = vmatprep.subr.mxu0 %v1186
        %1297 = vmatpush1.msra.mxu0 %v1185
        %1298 = vmatprep.subr.mxu0 %v1190
        %1299 = vmatpush1.msra.mxu0 %v1189
        %1300 = vmatprep.subr.mxu0 %v1194
        %1301 = vmatpush1.msra.mxu0 %v1193
        %1302 = vmatprep.subr.mxu0 %v1198
        %1303 = vmatpush1.msra.mxu0 %v1197
        %1304 = vmatprep.subr.mxu0 0.0
        %1305 = vmatpush1.msra.mxu0 0.0
        %1306 = vmatprep.subr.mxu0 0.0
        %1307 = vmatpush1.msra.mxu0 0.0
        %1308 = vmatprep.subr.mxu0 0.0
        %1309 = vmatpush1.msra.mxu0 0.0
        %1310 = vmatprep.subr.mxu0 0.0
        %1311 = vmatpush1.msra.mxu0 0.0
        %1312 = vmatprep.subr.mxu0 0.0
        %1313 = vmatpush1.msra.mxu0 0.0
        %1314 = vmatprep.subr.mxu0 0.0
        %1315 = vmatpush1.msra.mxu0 0.0
        %1316 = vmatprep.subr.mxu0 0.0
        %1317 = vmatpush1.msra.mxu0 0.0
        %1318 = vmatprep.subr.mxu0 0.0
        %1319 = vmatpush1.msra.mxu0 0.0
        %1320 = vmatprep.subr.mxu0 0.0
        %1321 = vmatpush1.msra.mxu0 0.0
        %1322 = vmatprep.subr.mxu0 0.0
        %1323 = vmatpush1.msra.mxu0 0.0
        %1324 = vmatprep.subr.mxu0 0.0
        %1325 = vmatpush1.msra.mxu0 0.0
        %1326 = vmatprep.subr.mxu0 0.0
        %1327 = vmatpush1.msra.mxu0 0.0
        %1328 = vmatprep.subr.mxu0 0.0
        %1329 = vmatpush1.msra.mxu0 0.0
        %1330 = vmatprep.subr.mxu0 0.0
        %1331 = vmatpush1.msra.mxu0 0.0
        %1332 = vmatprep.subr.mxu0 0.0
        %1333 = vmatpush1.msra.mxu0 0.0
        %1334 = vmatprep.subr.mxu0 0.0
        %1335 = vmatpush1.msra.mxu0 0.0
        %1336 = vmatprep.subr.mxu0 0.0
        %1337 = vmatpush1.msra.mxu0 0.0
        %1338 = vmatprep.subr.mxu0 0.0
        %1339 = vmatpush1.msra.mxu0 0.0
        %1340 = vmatprep.subr.mxu0 0.0
        %1341 = vmatpush1.msra.mxu0 0.0
        %1342 = vmatprep.subr.mxu0 0.0
        %1343 = vmatpush1.msra.mxu0 0.0
        %1344 = vmatprep.subr.mxu0 0.0
        %1345 = vmatpush1.msra.mxu0 0.0
        %1346 = vmatprep.subr.mxu0 0.0
        %1347 = vmatpush1.msra.mxu0 0.0
        %1348 = vmatprep.subr.mxu0 0.0
        %1349 = vmatpush1.msra.mxu0 0.0
        %1350 = vmatprep.subr.mxu0 0.0
        %1351 = vmatpush1.msra.mxu0 0.0
        %1352 = vmatprep.subr.mxu0 0.0
        %1353 = vmatpush1.msra.mxu0 0.0
        %1354 = vmatprep.subr.mxu0 0.0
        %1355 = vmatpush1.msra.mxu0 0.0
        %1356 = vmatprep.subr.mxu0 0.0
        %1357 = vmatpush1.msra.mxu0 0.0
        %1358 = vmatprep.subr.mxu0 0.0
        %1359 = vmatpush1.msra.mxu0 0.0
        %1360 = vmatprep.mubr.f32.mxu0 0.0
        %1361 = vmatmul.mubr.f32.gmra.mrb[0].mxu0 %v1214
        %v1362 = vpop.f32.mrb[0].mxu0
        %v1363 = vadd.f32 %v1206, %v1362
        %v1364 = vpop.f32.mrb[0].mxu0
        %v1365 = vadd.f32 %v1206, %v1364
        %1366 = vmatprep.mubr.f32.mxu0 0.0
        %1367 = vmatmul.mubr.f32.gmra.mrb[0].mxu0 %v1217
        %v1368 = vpop.f32.mrb[0].mxu0
        %v1369 = vadd.f32 %v1211, %v1368
        %v1370 = vpop.f32.mrb[0].mxu0
        %v1371 = vadd.f32 %v1211, %v1370
        %1372 = vdwg.mxu0
        %1373 = vst [vmem:[%s473] sm:$0xff] %v1286
        %1374 = vst [vmem:[%s473 + $0x8] sm:$0xff] %v1288
        %1375 = vst [vmem:[%s473 + $0x10] sm:$0xff] %v1363
        %1376 = vst [vmem:[%s473 + $0x18] sm:$0xff] %v1365
        %1377 = vst [vmem:[%s473 + $0x20] sm:$0xff] %v1292
        %1378 = vst [vmem:[%s473 + $0x28] sm:$0xff] %v1294
        %1379 = vst [vmem:[%s473 + $0x30] sm:$0xff] %v1369
        %1380 = vst [vmem:[%s473 + $0x38] sm:$0xff] %v1371
        %v1381 = vld [vmem:[%s435] sm:$0xff]
        %v1382 = vld [vmem:[%s435 + $0x8] sm:$0xff]
        %v1383 = vld [vmem:[%s435 + $0x10] sm:$0xff]
        %v1384 = vld [vmem:[%s435 + $0x18] sm:$0xff]
        %v1385 = vld [vmem:[%s435 + $0x20] sm:$0xff]
        %v1386 = vld [vmem:[%s435 + $0x28] sm:$0xff]
        %v1387 = vld [vmem:[%s435 + $0x30] sm:$0xff]
        %v1388 = vld [vmem:[%s435 + $0x38] sm:$0xff]
        %v1389 = vsub.f32 %v1286, %v1381
        %v1390 = vsub.f32 %v1288, %v1382
        %v1391 = vsub.f32 %v1363, %v1383
        %v1392 = vsub.f32 %v1365, %v1384
        %v1393 = vsub.f32 %v1292, %v1385
        %v1394 = vsub.f32 %v1294, %v1386
        %v1395 = vsub.f32 %v1369, %v1387
        %v1396 = vsub.f32 %v1371, %v1388
        %s1397 = smul.u32 %s26, 512
        %v1398 = vlaneseq
        %v1399 = vand.u32 %v1398, 127
        %v1400 = vadd.s32 %v1399, 128
        %v1401 = vadd.s32 %v1399, 256
        %v1402 = vadd.s32 %v1399, 384
        %v1403 = vstv %s1397
        %v1404 = vadd.s32 %v1403, %v1399
        %v1405 = vadd.s32 %v1403, %v1400
        %v1406 = vadd.s32 %v1403, %v1401
        %v1407 = vadd.s32 %v1403, %v1402
        %vm1408 = vcmp.lt.s32.totalorder %v1404, 1000
        %vm1409 = vcmp.lt.s32.totalorder %v1405, 1000
        %vm1410 = vcmp.lt.s32.totalorder %v1406, 1000
        %vm1411 = vcmp.lt.s32.totalorder %v1407, 1000
        %v1412 = vsel %vm1408, %v1389, 0.0
        %v1413 = vsel %vm1409, %v1390, 0.0
        %v1414 = vsel %vm1410, %v1391, 0.0
        %v1415 = vsel %vm1411, %v1392, 0.0
        %v1416 = vsel %vm1408, %v1393, 0.0
        %v1417 = vsel %vm1409, %v1394, 0.0
        %v1418 = vsel %vm1410, %v1395, 0.0
        %v1419 = vsel %vm1411, %v1396, 0.0
        %v1420 = vmul.f32 %v1412, %v1412
        %v1421 = vmul.f32 %v1413, %v1413
        %v1422 = vmul.f32 %v1414, %v1414
        %v1423 = vmul.f32 %v1415, %v1415
        %v1424 = vmul.f32 %v1416, %v1416
        %v1425 = vmul.f32 %v1417, %v1417
        %v1426 = vmul.f32 %v1418, %v1418
        %v1427 = vmul.f32 %v1419, %v1419
        %v1428 = vadd.f32 %v1420, %v1421
        %v1429 = vadd.f32 %v1428, %v1422
        %v1430 = vadd.f32 %v1429, %v1423
        %v1431 = vadd.f32 %v1430, %v1424
        %v1432 = vadd.f32 %v1431, %v1425
        %v1433 = vadd.f32 %v1432, %v1426
        %v1434 = vadd.f32 %v1433, %v1427
        %1435 = vadd.xlane.f32.xlu0 %v1434
        %v1436 = vpop.xlane.xlu0 %1435
        %v1437 = vrot.slane %v1436, 4
        %v1438 = vadd.f32 %v1436, %v1437
        %v1439 = vrot.slane %v1438, 2
        %v1440 = vadd.f32 %v1438, %v1439
        %v1441 = vrot.slane %v1440, 1
        %v1442 = vadd.f32 %v1440, %v1441
        %s1443 = vtos %v1442
        %v1444 = vstv %s1443
        %1445 = vst [vmem:[%s486] sm:$0xff] %v1444
        %s1446 = sand.u32 %s254, 1
        %s1447 = scalar_lea.sflag [#allocation5], %s1446
        %s1448 = sand.u32 %s254, 1
        %s1449 = smul.addr %s1448, 64
        %s1450 = scalar_lea.vmem [#allocation4], %s1449
        %p1451 = scmp.lt.s32.totalorder %s26, 1
        %s1452 = scalar_select %p1451, %s26, 1
        %s1453 = smul.addr %s1452, 8
        %s1454 = scalar_lea.vmem %s11, %s1453
        // Predicated region
        $region107: #{ffnn_forward.1} parent=97 // pred_check
          %p1455 = pneg %p264
        $region108: #{ffnn_forward.1} parent=97 // pred_check_branch
          %1457 = sbr.rel (%p1455) target = $region110
        $region109: #{ffnn_forward.1} parent=97 // pred_region
          %s1458 = smul.u32 4, %s26
          %s1460 = ssub.s32 1024, 1024
          %1461 = vsyncadd %s1447, %s1460
          %s1462 = smul.addr %s1458, 128
          %s1463 = scalar_lea.hbm %s10, %s1462
          %s1464 = sshll.u32 %s1450, 4
          %s1465 = int_to_ptr.vmem [resolvable:$true] %s1464
          %1470 = dma.vmem_to_hbm [thread:$0]  %s1465, 1024, %s1463, %s1447, 512, 1024, 32
        $region110: #{ffnn_forward.1} parent=97 // pred_fallthru
          _
        // Predicated region
        $region111: #{ffnn_forward.1} parent=97 // pred_check
          %p1471 = pneg %p290
        $region112: #{ffnn_forward.1} parent=97 // pred_check_branch
          %1473 = sbr.rel (%p1471) target = $region114
        $region113: #{ffnn_forward.1} parent=97 // pred_region
          _
        $region114: #{ffnn_forward.1} parent=97 // pred_fallthru
          _
      $region98: #{ffnn_forward.1} parent=5 // pred_fallthru
        _
      %p1474 = scmp.le.s32.totalorder 2, %s21
      // Predicated region
      $region115: #{ffnn_forward.1} parent=5 // pred_check
        %p1475 = pneg %p1474
      $region116: #{ffnn_forward.1} parent=5 // pred_check_branch
        %1477 = sbr.rel (%p1475) target = $region118
      $region117: #{ffnn_forward.1} parent=5 // pred_region
        %s1478 = ssub.s32 %s21, 2
        // Predicated region
        $region119: #{ffnn_forward.1} parent=117 // pred_check
          %p1479 = pneg %p270
        $region120: #{ffnn_forward.1} parent=117 // pred_check_branch
          %1481 = sbr.rel (%p1479) target = $region122
        $region121: #{ffnn_forward.1} parent=117 // pred_region
          %s1482 = sand.u32 %s255, 1
          %s1483 = scalar_lea.sflag [#allocation5], %s1482
          %s1484 = sand.u32 %s255, 1
          %s1485 = smul.addr %s1484, 64
          %s1486 = scalar_lea.vmem [#allocation4], %s1485
          %1487 = dma.done %s1483, 1024
        $region122: #{ffnn_forward.1} parent=117 // pred_fallthru
          _
        // Predicated region
        $region123: #{ffnn_forward.1} parent=117 // pred_check
          %p1488 = pneg %p296
        $region124: #{ffnn_forward.1} parent=117 // pred_check_branch
          %1490 = sbr.rel (%p1488) target = $region126
        $region125: #{ffnn_forward.1} parent=117 // pred_region
          %p1491 = scmp.lt.s32.totalorder %s27, 1
          %s1492 = scalar_select %p1491, %s27, 1
          %s1493 = smul.addr %s1492, 8
          %s1494 = scalar_lea.vmem %s11, %s1493
        $region126: #{ffnn_forward.1} parent=117 // pred_fallthru
          _
      $region118: #{ffnn_forward.1} parent=5 // pred_fallthru
        _
    $region6: #{ffnn_forward.1} parent=1 // loop_footer
      %s25 = sadd.s32 1, %s21
    $region7: #{ffnn_forward.1} parent=1 // loop_footer_branch
      %20 = sbr.rel target = $region3
    $region8: #{ffnn_forward.1} parent=1 // loop_exit
      _
    %1495 = vsyncpa [#allocation5], 1
    %s1496 = scalar_lea.sflag [#allocation5], 1
    %1497 = vsyncpa %s1496, 1

</llo_original>
